<compile_context>
chip_gen: v6e
topology: v6e:2x2x1
jax: 0.10.0
libtpu: 0.0.40
codegen_flags: <defaults>
</compile_context>

<pallas_src>
import functools

import jax
import jax.numpy as jnp
from jax.experimental import pallas as pl
from jax.experimental.pallas import tpu as pltpu


def _round_up(v, m):
    return ((v + m - 1) // m) * m


def _pad_to(a, shape):
    pads = [(0, t - s) for s, t in zip(a.shape, shape)]
    return jnp.pad(a, pads)


def _rcab_kernel(x_ref, masks_ref, red_ref,
                 w1_ref, g1_ref, bt1_ref,
                 w2_ref, g2_ref, bt2_ref,
                 wc1_ref, bc1_ref, wc2_ref, bc2_ref,
                 out_ref, stacked_ref, *, N, H, W, K):
    """RCAB_bn_3 forward on a lane-dense (Cp, M) layout, M = N*H*W on lanes."""
    eps = 1e-5
    P = K // 2
    HW = H * W
    M = N * HW
    Cp = x_ref.shape[0]
    S = K * K * Cp
    S_pad = stacked_ref.shape[0]
    inv_M = 1.0 / float(M)
    inv_HW = 1.0 / float(HW)

    x = x_ref[...]                      # (Cp, M) f32; also the residual
    masks = masks_ref[...]              # (K*K, M) f32 edge masks, shared by both convs
    red = red_ref[...]                  # (M, N+1) f32: per-batch one-hot cols + ones col

    # Zero the pad rows of the stacked scratch once (their weight columns are
    # zero, but uninitialized VMEM could hold NaNs and NaN * 0 = NaN).
    if S_pad > S:
        stacked_ref[S:, :] = jnp.zeros((S_pad - S, M), jnp.float32)

    def conv_same(h, w_flat_bf16):
        """'same' KxK conv: XLU rolls + precomputed masks streamed into the VMEM
        scratch, then one MXU matmul (bf16 operands, f32 accumulation)."""
        idx = 0
        for ky in range(K):
            dy = ky - P
            for kx in range(K):
                dx = kx - P
                # output lane m reads input at flat index m + dy*W + dx (when valid)
                s = (-(dy * W + dx)) % M
                shifted = pltpu.roll(h, shift=s, axis=1) if s else h
                stacked_ref[idx * Cp:(idx + 1) * Cp, :] = shifted * masks[idx:idx + 1, :]
                idx += 1
        # TODO(synk): for production shapes make the scratch itself bf16 with
        # 16-row-aligned tap slots to also halve its VMEM footprint.
        return jnp.dot(w_flat_bf16, stacked_ref[...].astype(jnp.bfloat16),
                       preferred_element_type=jnp.float32)

    def bn_scale_shift(sums, ssq, gamma, beta):
        """Training-mode BatchNorm folded into one per-channel scale/shift."""
        mu = sums[:, N:N + 1] * inv_M
        var = jnp.maximum(ssq[:, N:N + 1] * inv_M - mu * mu, 0.0)   # clamp >= 0
        s = gamma * jax.lax.rsqrt(var + eps)
        t = beta - mu * s
        return s, t

    # ---- conv1 (n_feat -> 6) -> BN(6) -> ReLU  (conv bias cancelled by BN mean)
    acc1 = conv_same(x, w1_ref[...])
    sums1 = jnp.dot(acc1, red, preferred_element_type=jnp.float32)         # (Cp, N+1)
    ssq1 = jnp.dot(acc1 * acc1, red, preferred_element_type=jnp.float32)   # (Cp, N+1)
    s1, t1 = bn_scale_shift(sums1, ssq1, g1_ref[...], bt1_ref[...])
    h1 = jnp.maximum(acc1 * s1 + t1, 0.0)

    # ---- conv2 (6 -> n_feat) -> BN(n_feat)
    acc2 = conv_same(h1, w2_ref[...])
    sums2 = jnp.dot(acc2, red, preferred_element_type=jnp.float32)         # (Cp, N+1)
    ssq2 = jnp.dot(acc2 * acc2, red, preferred_element_type=jnp.float32)
    s2, t2 = bn_scale_shift(sums2, ssq2, g2_ref[...], bt2_ref[...])

    # ---- CALayer_3: per-image GAP -> 1x1 (C->4) -> ReLU -> 1x1 (4->C) -> sigmoid
    # GAP of the *normalized* h2 is an affine map of the raw per-batch means,
    # which were already produced by the MXU reduction above (columns 0..N-1).
    pooled = (sums2[:, 0:N] * inv_HW) * s2 + t2                            # (Cp, N)
    z = jnp.maximum(
        jnp.dot(wc1_ref[...], pooled, preferred_element_type=jnp.float32) + bc1_ref[...],
        0.0)                                                               # (Cp, N)
    att = jax.nn.sigmoid(
        jnp.dot(wc2_ref[...], z, preferred_element_type=jnp.float32) + bc2_ref[...])

    # ---- epilogue: BN2 scale/shift + channel attention + residual, per batch
    # chunk (lanes are batch-contiguous; HW is a multiple of 128 at these shapes
    # so every store is an unmasked lane-dense vst).
    for n in range(N):
        lo = n * HW
        h2_n = acc2[:, lo:lo + HW] * s2 + t2
        out_ref[:, lo:lo + HW] = h2_n * att[:, n:n + 1] + x[:, lo:lo + HW]


def rcab_bn_3_forward(x_nchw, params, kernel_size=3):
    """x_nchw: (N, C, H, W) float32; returns (N, C, H, W) float32."""
    (w1, b1, g1, bt1, w2, b2, g2, bt2, wc1, bc1, wc2, bc2) = params
    # b1/b2 are algebraically cancelled by the training-mode BN mean subtraction.
    del b1, b2

    assert kernel_size % 2 == 1, "only odd kernel_size matches padding=K//2"
    N, C, H, W = x_nchw.shape
    K = kernel_size
    P = K // 2
    Cm = w1.shape[3]                    # mid channels (= 6)
    Ca = wc1.shape[1]                   # attention bottleneck (= 4)
    HW = H * W
    M = N * HW
    Cp = _round_up(max(C, Cm, Ca), 8)   # pad all channel dims to the sublane tile
    S = K * K * Cp
    S_pad = _round_up(S, 16)            # bf16-friendly contraction length

    f32 = jnp.float32
    bf16 = jnp.bfloat16

    # lane-dense input / residual: (Cp, N*H*W), channels zero-padded
    x_cm = jnp.transpose(x_nchw.astype(f32), (1, 0, 2, 3)).reshape(C, M)
    x_p = _pad_to(x_cm, (Cp, M))

    # Edge masks (K*K, M) and reduction matrix (M, N+1), built once here and
    # shared by both convs / both BNs / the attention pooling.
    pos = jnp.arange(M, dtype=jnp.int32)
    y_idx = (pos // W) % H
    x_idx = pos % W
    mrows = []
    for ky in range(K):
        dy = ky - P
        yv = y_idx + dy
        oky = (yv >= 0) & (yv < H)
        for kx in range(K):
            dx = kx - P
            xv = x_idx + dx
            mrows.append(oky & (xv >= 0) & (xv < W))
    masks = jnp.stack(mrows, axis=0).astype(f32)                   # (K*K, M)

    batch_idx = pos // HW
    seg = (batch_idx[:, None] == jnp.arange(N, dtype=jnp.int32)[None, :]).astype(f32)
    red = jnp.concatenate([seg, jnp.ones((M, 1), f32)], axis=1)    # (M, N+1)

    # conv weights flattened to (Cp_out, S_pad), column order (ky, kx, cin), bf16
    def flat_w(w):
        wp = _pad_to(w.astype(f32), (K, K, Cp, Cp))
        wf = jnp.transpose(wp, (3, 0, 1, 2)).reshape(Cp, S)
        return _pad_to(wf, (Cp, S_pad)).astype(bf16)

    w1_flat = flat_w(w1)
    w2_flat = flat_w(w2)

    g1_p = _pad_to(g1.astype(f32).reshape(-1), (Cp,)).reshape(Cp, 1)
    bt1_p = _pad_to(bt1.astype(f32).reshape(-1), (Cp,)).reshape(Cp, 1)
    g2_p = _pad_to(g2.astype(f32).reshape(-1), (Cp,)).reshape(Cp, 1)
    bt2_p = _pad_to(bt2.astype(f32).reshape(-1), (Cp,)).reshape(Cp, 1)

    wc1_t = _pad_to(jnp.transpose(wc1.astype(f32)), (Cp, Cp))      # (Ca, C) padded
    bc1_p = _pad_to(bc1.astype(f32).reshape(-1), (Cp,)).reshape(Cp, 1)
    wc2_t = _pad_to(jnp.transpose(wc2.astype(f32)), (Cp, Cp))      # (C, Ca) padded
    bc2_p = _pad_to(bc2.astype(f32).reshape(-1), (Cp,)).reshape(Cp, 1)

    vmem = pl.BlockSpec(memory_space=pltpu.MemorySpace.VMEM)
    out_cm = pl.pallas_call(
        functools.partial(_rcab_kernel, N=N, H=H, W=W, K=K),
        out_shape=jax.ShapeDtypeStruct((Cp, M), f32),
        in_specs=[vmem] * 13,
        out_specs=vmem,
        scratch_shapes=[pltpu.VMEM((S_pad, M), f32)],
    )(x_p, masks, red, w1_flat, g1_p, bt1_p, w2_flat, g2_p, bt2_p,
      wc1_t, bc1_p, wc2_t, bc2_p)

    # drop padded channels; the reshuffle back to NCHW is plain XLA glue
    return out_cm[:C].reshape(C, N, H, W).transpose(1, 0, 2, 3)


def init_params(key, n_feat, kernel_size=3, c_mid=6, c_att=4):
    """Deterministic synthetic parameters (PyTorch shapes, HWIO-style weights)."""
    ks = jax.random.split(key, 8)
    K = kernel_size

    def conv_w(k, kh, kw, cin, cout):
        fan_in = kh * kw * cin
        return (jax.random.normal(k, (kh, kw, cin, cout), jnp.float32)
                / jnp.sqrt(jnp.float32(fan_in)))

    w1 = conv_w(ks[0], K, K, n_feat, c_mid)
    b1 = 0.1 * jax.random.normal(ks[1], (1, c_mid), jnp.float32)
    g1 = 1.0 + 0.1 * jax.random.normal(ks[2], (1, c_mid), jnp.float32)
    bt1 = 0.1 * jax.random.normal(ks[3], (1, c_mid), jnp.float32)

    w2 = conv_w(ks[4], K, K, c_mid, n_feat)
    b2 = 0.1 * jax.random.normal(ks[5], (1, n_feat), jnp.float32)
    g2 = 1.0 + 0.1 * jax.random.normal(ks[6], (1, n_feat), jnp.float32)
    bt2 = 0.1 * jax.random.normal(ks[7], (1, n_feat), jnp.float32)

    ks2 = jax.random.split(jax.random.fold_in(key, 1), 4)
    wc1 = (jax.random.normal(ks2[0], (n_feat, c_att), jnp.float32)
           / jnp.sqrt(jnp.float32(n_feat)))
    bc1 = 0.1 * jax.random.normal(ks2[1], (1, c_att), jnp.float32)
    wc2 = (jax.random.normal(ks2[2], (c_att, n_feat), jnp.float32)
           / jnp.sqrt(jnp.float32(c_att)))
    bc2 = 0.1 * jax.random.normal(ks2[3], (1, n_feat), jnp.float32)

    return (w1, b1, g1, bt1, w2, b2, g2, bt2, wc1, bc1, wc2, bc2)


def _reference(x_nchw, params, kernel_size):
    """Pure-JAX (XLA, f32) reference of the PyTorch module in training mode."""
    (w1, b1, g1, bt1, w2, b2, g2, bt2, wc1, bc1, wc2, bc2) = params
    eps = 1e-5
    P = kernel_size // 2
    x = jnp.transpose(x_nchw, (0, 2, 3, 1)).astype(jnp.float32)   # NHWC

    def conv(h, w, b):
        out = jax.lax.conv_general_dilated(
            h, w, window_strides=(1, 1), padding=((P, P), (P, P)),
            dimension_numbers=("NHWC", "HWIO", "NHWC"))
        return out + b.reshape(1, 1, 1, -1)

    def bn(h, g, bt):
        mu = jnp.mean(h, axis=(0, 1, 2), keepdims=True)
        var = jnp.mean((h - mu) ** 2, axis=(0, 1, 2), keepdims=True)
        return ((h - mu) * jax.lax.rsqrt(var + eps) * g.reshape(1, 1, 1, -1)
                + bt.reshape(1, 1, 1, -1))

    h = jnp.maximum(bn(conv(x, w1, b1), g1, bt1), 0.0)
    h = bn(conv(h, w2, b2), g2, bt2)
    y = jnp.mean(h, axis=(1, 2))                                   # (N, C)
    y = jnp.maximum(jnp.dot(y, wc1) + bc1, 0.0)
    y = jax.nn.sigmoid(jnp.dot(y, wc2) + bc2)
    out = h * y[:, None, None, :] + x
    return jnp.transpose(out, (0, 3, 1, 2))


if __name__ == "__main__":
    key = jax.random.PRNGKey(0)
    n_feat, kernel_size = 4, 3
    N, H, W = 2, 16, 16

    kx_, kp = jax.random.split(key)
    x = jax.random.normal(kx_, (N, n_feat, H, W), jnp.float32)   # NCHW, like PyTorch
    params = init_params(kp, n_feat, kernel_size)

    out = rcab_bn_3_forward(x, params, kernel_size)
    jax.block_until_ready(out)
    assert out.shape == (N, n_feat, H, W)

    ref = _reference(x, params, kernel_size)
    err = float(jnp.max(jnp.abs(out - ref)))
    # bf16 conv-matmul operands cost ~1e-2 abs error vs the f32 reference;
    # any structural bug (masks, rolls, BN, attention) would show up as O(1).
    assert err < 3e-2, f"kernel/reference mismatch: max abs err = {err}"
    print("KERNEL_OK")
</pallas_src>

<mosaic_0001>
module attributes {stable_mosaic.version = 11 : i64} {
  func.func @_rcab_kernel(%arg0: memref<8x512xf32, #tpu.memory_space<vmem>>, %arg1: memref<9x512xf32, #tpu.memory_space<vmem>>, %arg2: memref<512x3xf32, #tpu.memory_space<vmem>>, %arg3: memref<8x80xbf16, #tpu.memory_space<vmem>>, %arg4: memref<8x1xf32, #tpu.memory_space<vmem>>, %arg5: memref<8x1xf32, #tpu.memory_space<vmem>>, %arg6: memref<8x80xbf16, #tpu.memory_space<vmem>>, %arg7: memref<8x1xf32, #tpu.memory_space<vmem>>, %arg8: memref<8x1xf32, #tpu.memory_space<vmem>>, %arg9: memref<8x8xf32, #tpu.memory_space<vmem>>, %arg10: memref<8x1xf32, #tpu.memory_space<vmem>>, %arg11: memref<8x8xf32, #tpu.memory_space<vmem>>, %arg12: memref<8x1xf32, #tpu.memory_space<vmem>>, %arg13: memref<8x512xf32, #tpu.memory_space<vmem>>, %arg14: memref<80x512xf32, #tpu.memory_space<vmem>>) attributes {dimension_semantics = [], scalar_prefetch = 0 : i64, scratch_operands = 1 : i64, tpu.core_type = #tpu.core_type<tc>} {
    %c0 = arith.constant 0 : index
    %c0_0 = arith.constant 0 : index
    %0 = vector.load %arg0[%c0, %c0_0] : memref<8x512xf32, #tpu.memory_space<vmem>>, vector<8x512xf32>
    %c0_1 = arith.constant 0 : index
    %c0_2 = arith.constant 0 : index
    %1 = vector.load %arg1[%c0_1, %c0_2] : memref<9x512xf32, #tpu.memory_space<vmem>>, vector<9x512xf32>
    %c0_3 = arith.constant 0 : index
    %c0_4 = arith.constant 0 : index
    %2 = vector.load %arg2[%c0_3, %c0_4] : memref<512x3xf32, #tpu.memory_space<vmem>>, vector<512x3xf32>
    %cst = arith.constant 0.000000e+00 : f32
    %3 = vector.broadcast %cst : f32 to vector<8x512xf32>
    %c72 = arith.constant 72 : index
    %c0_5 = arith.constant 0 : index
    %4 = vector.load %arg14[%c72, %c0_5] : memref<80x512xf32, #tpu.memory_space<vmem>>, vector<8x512xf32>
    tpu.vector_store %arg14[%c72, %c0_5], %3 {strides = array<i32>} : memref<80x512xf32, #tpu.memory_space<vmem>>, vector<8x512xf32>,
    %c0_6 = arith.constant 0 : index
    %c0_7 = arith.constant 0 : index
    %5 = vector.load %arg3[%c0_6, %c0_7] : memref<8x80xbf16, #tpu.memory_space<vmem>>, vector<8x80xbf16>
    %c17_i32 = arith.constant 17 : i32
    %6 = tpu.dynamic_rotate %0 by %c17_i32 dim 1 : vector<8x512xf32>, i32 -> vector<8x512xf32>
    %7 = vector.extract_strided_slice %1 {offsets = [0, 0], sizes = [1, 512], strides = [1, 1]} : vector<9x512xf32> to vector<1x512xf32>
    %8 = vector.broadcast %7 : vector<1x512xf32> to vector<8x512xf32>
    %9 = arith.mulf %6, %8 : vector<8x512xf32>
    %c0_8 = arith.constant 0 : index
    %c0_9 = arith.constant 0 : index
    %10 = vector.load %arg14[%c0_8, %c0_9] : memref<80x512xf32, #tpu.memory_space<vmem>>, vector<8x512xf32>
    tpu.vector_store %arg14[%c0_8, %c0_9], %9 {strides = array<i32>} : memref<80x512xf32, #tpu.memory_space<vmem>>, vector<8x512xf32>,
    %c16_i32 = arith.constant 16 : i32
    %11 = tpu.dynamic_rotate %0 by %c16_i32 dim 1 : vector<8x512xf32>, i32 -> vector<8x512xf32>
    %12 = vector.extract_strided_slice %1 {offsets = [1, 0], sizes = [1, 512], strides = [1, 1]} : vector<9x512xf32> to vector<1x512xf32>
    %13 = vector.broadcast %12 : vector<1x512xf32> to vector<8x512xf32>
    %14 = arith.mulf %11, %13 : vector<8x512xf32>
    %c8 = arith.constant 8 : index
    %c0_10 = arith.constant 0 : index
    %15 = vector.load %arg14[%c8, %c0_10] : memref<80x512xf32, #tpu.memory_space<vmem>>, vector<8x512xf32>
    tpu.vector_store %arg14[%c8, %c0_10], %14 {strides = array<i32>} : memref<80x512xf32, #tpu.memory_space<vmem>>, vector<8x512xf32>,
    %c15_i32 = arith.constant 15 : i32
    %16 = tpu.dynamic_rotate %0 by %c15_i32 dim 1 : vector<8x512xf32>, i32 -> vector<8x512xf32>
    %17 = vector.extract_strided_slice %1 {offsets = [2, 0], sizes = [1, 512], strides = [1, 1]} : vector<9x512xf32> to vector<1x512xf32>
    %18 = vector.broadcast %17 : vector<1x512xf32> to vector<8x512xf32>
    %19 = arith.mulf %16, %18 : vector<8x512xf32>
    %c16 = arith.constant 16 : index
    %c0_11 = arith.constant 0 : index
    %20 = vector.load %arg14[%c16, %c0_11] : memref<80x512xf32, #tpu.memory_space<vmem>>, vector<8x512xf32>
    tpu.vector_store %arg14[%c16, %c0_11], %19 {strides = array<i32>} : memref<80x512xf32, #tpu.memory_space<vmem>>, vector<8x512xf32>,
    %c1_i32 = arith.constant 1 : i32
    %21 = tpu.dynamic_rotate %0 by %c1_i32 dim 1 : vector<8x512xf32>, i32 -> vector<8x512xf32>
    %22 = vector.extract_strided_slice %1 {offsets = [3, 0], sizes = [1, 512], strides = [1, 1]} : vector<9x512xf32> to vector<1x512xf32>
    %23 = vector.broadcast %22 : vector<1x512xf32> to vector<8x512xf32>
    %24 = arith.mulf %21, %23 : vector<8x512xf32>
    %c24 = arith.constant 24 : index
    %c0_12 = arith.constant 0 : index
    %25 = vector.load %arg14[%c24, %c0_12] : memref<80x512xf32, #tpu.memory_space<vmem>>, vector<8x512xf32>
    tpu.vector_store %arg14[%c24, %c0_12], %24 {strides = array<i32>} : memref<80x512xf32, #tpu.memory_space<vmem>>, vector<8x512xf32>,
    %26 = vector.extract_strided_slice %1 {offsets = [4, 0], sizes = [1, 512], strides = [1, 1]} : vector<9x512xf32> to vector<1x512xf32>
    %27 = vector.broadcast %26 : vector<1x512xf32> to vector<8x512xf32>
    %28 = arith.mulf %0, %27 : vector<8x512xf32>
    %c32 = arith.constant 32 : index
    %c0_13 = arith.constant 0 : index
    %29 = vector.load %arg14[%c32, %c0_13] : memref<80x512xf32, #tpu.memory_space<vmem>>, vector<8x512xf32>
    tpu.vector_store %arg14[%c32, %c0_13], %28 {strides = array<i32>} : memref<80x512xf32, #tpu.memory_space<vmem>>, vector<8x512xf32>,
    %c511_i32 = arith.constant 511 : i32
    %30 = tpu.dynamic_rotate %0 by %c511_i32 dim 1 : vector<8x512xf32>, i32 -> vector<8x512xf32>
    %31 = vector.extract_strided_slice %1 {offsets = [5, 0], sizes = [1, 512], strides = [1, 1]} : vector<9x512xf32> to vector<1x512xf32>
    %32 = vector.broadcast %31 : vector<1x512xf32> to vector<8x512xf32>
    %33 = arith.mulf %30, %32 : vector<8x512xf32>
    %c40 = arith.constant 40 : index
    %c0_14 = arith.constant 0 : index
    %34 = vector.load %arg14[%c40, %c0_14] : memref<80x512xf32, #tpu.memory_space<vmem>>, vector<8x512xf32>
    tpu.vector_store %arg14[%c40, %c0_14], %33 {strides = array<i32>} : memref<80x512xf32, #tpu.memory_space<vmem>>, vector<8x512xf32>,
    %c497_i32 = arith.constant 497 : i32
    %35 = tpu.dynamic_rotate %0 by %c497_i32 dim 1 : vector<8x512xf32>, i32 -> vector<8x512xf32>
    %36 = vector.extract_strided_slice %1 {offsets = [6, 0], sizes = [1, 512], strides = [1, 1]} : vector<9x512xf32> to vector<1x512xf32>
    %37 = vector.broadcast %36 : vector<1x512xf32> to vector<8x512xf32>
    %38 = arith.mulf %35, %37 : vector<8x512xf32>
    %c48 = arith.constant 48 : index
    %c0_15 = arith.constant 0 : index
    %39 = vector.load %arg14[%c48, %c0_15] : memref<80x512xf32, #tpu.memory_space<vmem>>, vector<8x512xf32>
    tpu.vector_store %arg14[%c48, %c0_15], %38 {strides = array<i32>} : memref<80x512xf32, #tpu.memory_space<vmem>>, vector<8x512xf32>,
    %c496_i32 = arith.constant 496 : i32
    %40 = tpu.dynamic_rotate %0 by %c496_i32 dim 1 : vector<8x512xf32>, i32 -> vector<8x512xf32>
    %41 = vector.extract_strided_slice %1 {offsets = [7, 0], sizes = [1, 512], strides = [1, 1]} : vector<9x512xf32> to vector<1x512xf32>
    %42 = vector.broadcast %41 : vector<1x512xf32> to vector<8x512xf32>
    %43 = arith.mulf %40, %42 : vector<8x512xf32>
    %c56 = arith.constant 56 : index
    %c0_16 = arith.constant 0 : index
    %44 = vector.load %arg14[%c56, %c0_16] : memref<80x512xf32, #tpu.memory_space<vmem>>, vector<8x512xf32>
    tpu.vector_store %arg14[%c56, %c0_16], %43 {strides = array<i32>} : memref<80x512xf32, #tpu.memory_space<vmem>>, vector<8x512xf32>,
    %c495_i32 = arith.constant 495 : i32
    %45 = tpu.dynamic_rotate %0 by %c495_i32 dim 1 : vector<8x512xf32>, i32 -> vector<8x512xf32>
    %46 = vector.extract_strided_slice %1 {offsets = [8, 0], sizes = [1, 512], strides = [1, 1]} : vector<9x512xf32> to vector<1x512xf32>
    %47 = vector.broadcast %46 : vector<1x512xf32> to vector<8x512xf32>
    %48 = arith.mulf %45, %47 : vector<8x512xf32>
    %c64 = arith.constant 64 : index
    %c0_17 = arith.constant 0 : index
    %49 = vector.load %arg14[%c64, %c0_17] : memref<80x512xf32, #tpu.memory_space<vmem>>, vector<8x512xf32>
    tpu.vector_store %arg14[%c64, %c0_17], %48 {strides = array<i32>} : memref<80x512xf32, #tpu.memory_space<vmem>>, vector<8x512xf32>,
    %c0_18 = arith.constant 0 : index
    %c0_19 = arith.constant 0 : index
    %50 = vector.load %arg14[%c0_18, %c0_19] : memref<80x512xf32, #tpu.memory_space<vmem>>, vector<80x512xf32>
    %51 = arith.truncf %50 : vector<80x512xf32> to vector<80x512xbf16>
    %cst_20 = arith.constant dense<0.000000e+00> : vector<8x512xf32>
    %52 = tpu.matmul %5, %51, %cst_20 {dimension_numbers = #tpu.dot_dimension_numbers<[1], [0], [0], [1], [0, 0, 1, 1], [], []>} : vector<8x80xbf16>, vector<80x512xbf16>, vector<8x512xf32> -> vector<8x512xf32>
    %cst_21 = arith.constant dense<0.000000e+00> : vector<8x3xf32>
    %53 = tpu.matmul %52, %2, %cst_21 {dimension_numbers = #tpu.dot_dimension_numbers<[1], [0], [0], [1], [0, 0, 1, 1], [], []>} : vector<8x512xf32>, vector<512x3xf32>, vector<8x3xf32> -> vector<8x3xf32>
    %54 = arith.mulf %52, %52 : vector<8x512xf32>
    %cst_22 = arith.constant dense<0.000000e+00> : vector<8x3xf32>
    %55 = tpu.matmul %54, %2, %cst_22 {dimension_numbers = #tpu.dot_dimension_numbers<[1], [0], [0], [1], [0, 0, 1, 1], [], []>} : vector<8x512xf32>, vector<512x3xf32>, vector<8x3xf32> -> vector<8x3xf32>
    %c0_23 = arith.constant 0 : index
    %c0_24 = arith.constant 0 : index
    %56 = vector.load %arg4[%c0_23, %c0_24] : memref<8x1xf32, #tpu.memory_space<vmem>>, vector<8x1xf32>
    %c0_25 = arith.constant 0 : index
    %c0_26 = arith.constant 0 : index
    %57 = vector.load %arg5[%c0_25, %c0_26] : memref<8x1xf32, #tpu.memory_space<vmem>>, vector<8x1xf32>
    %58 = vector.extract_strided_slice %53 {offsets = [0, 2], sizes = [8, 1], strides = [1, 1]} : vector<8x3xf32> to vector<8x1xf32>
    %cst_27 = arith.constant 0.001953125 : f32
    %59 = vector.broadcast %cst_27 : f32 to vector<8x1xf32>
    %60 = arith.mulf %58, %59 : vector<8x1xf32>
    %61 = vector.extract_strided_slice %55 {offsets = [0, 2], sizes = [8, 1], strides = [1, 1]} : vector<8x3xf32> to vector<8x1xf32>
    %cst_28 = arith.constant 0.001953125 : f32
    %62 = vector.broadcast %cst_28 : f32 to vector<8x1xf32>
    %63 = arith.mulf %61, %62 : vector<8x1xf32>
    %64 = arith.mulf %60, %60 : vector<8x1xf32>
    %65 = arith.subf %63, %64 : vector<8x1xf32>
    %cst_29 = arith.constant 0.000000e+00 : f32
    %66 = vector.broadcast %cst_29 : f32 to vector<8x1xf32>
    %67 = arith.maximumf %65, %66 : vector<8x1xf32>
    %cst_30 = arith.constant 9.99999974E-6 : f32
    %68 = vector.broadcast %cst_30 : f32 to vector<8x1xf32>
    %69 = arith.addf %67, %68 : vector<8x1xf32>
    %70 = math.rsqrt %69 : vector<8x1xf32>
    %71 = arith.mulf %56, %70 : vector<8x1xf32>
    %72 = arith.mulf %60, %71 : vector<8x1xf32>
    %73 = arith.subf %57, %72 : vector<8x1xf32>
    %74 = vector.broadcast %71 : vector<8x1xf32> to vector<8x512xf32>
    %75 = arith.mulf %52, %74 : vector<8x512xf32>
    %76 = vector.broadcast %73 : vector<8x1xf32> to vector<8x512xf32>
    %77 = arith.addf %75, %76 : vector<8x512xf32>
    %cst_31 = arith.constant 0.000000e+00 : f32
    %78 = vector.broadcast %cst_31 : f32 to vector<8x512xf32>
    %79 = arith.maximumf %77, %78 : vector<8x512xf32>
    %c0_32 = arith.constant 0 : index
    %c0_33 = arith.constant 0 : index
    %80 = vector.load %arg6[%c0_32, %c0_33] : memref<8x80xbf16, #tpu.memory_space<vmem>>, vector<8x80xbf16>
    %c17_i32_34 = arith.constant 17 : i32
    %81 = tpu.dynamic_rotate %79 by %c17_i32_34 dim 1 : vector<8x512xf32>, i32 -> vector<8x512xf32>
    %82 = vector.extract_strided_slice %1 {offsets = [0, 0], sizes = [1, 512], strides = [1, 1]} : vector<9x512xf32> to vector<1x512xf32>
    %83 = vector.broadcast %82 : vector<1x512xf32> to vector<8x512xf32>
    %84 = arith.mulf %81, %83 : vector<8x512xf32>
    %c0_35 = arith.constant 0 : index
    %c0_36 = arith.constant 0 : index
    %85 = vector.load %arg14[%c0_35, %c0_36] : memref<80x512xf32, #tpu.memory_space<vmem>>, vector<8x512xf32>
    tpu.vector_store %arg14[%c0_35, %c0_36], %84 {strides = array<i32>} : memref<80x512xf32, #tpu.memory_space<vmem>>, vector<8x512xf32>,
    %c16_i32_37 = arith.constant 16 : i32
    %86 = tpu.dynamic_rotate %79 by %c16_i32_37 dim 1 : vector<8x512xf32>, i32 -> vector<8x512xf32>
    %87 = vector.extract_strided_slice %1 {offsets = [1, 0], sizes = [1, 512], strides = [1, 1]} : vector<9x512xf32> to vector<1x512xf32>
    %88 = vector.broadcast %87 : vector<1x512xf32> to vector<8x512xf32>
    %89 = arith.mulf %86, %88 : vector<8x512xf32>
    %c8_38 = arith.constant 8 : index
    %c0_39 = arith.constant 0 : index
    %90 = vector.load %arg14[%c8_38, %c0_39] : memref<80x512xf32, #tpu.memory_space<vmem>>, vector<8x512xf32>
    tpu.vector_store %arg14[%c8_38, %c0_39], %89 {strides = array<i32>} : memref<80x512xf32, #tpu.memory_space<vmem>>, vector<8x512xf32>,
    %c15_i32_40 = arith.constant 15 : i32
    %91 = tpu.dynamic_rotate %79 by %c15_i32_40 dim 1 : vector<8x512xf32>, i32 -> vector<8x512xf32>
    %92 = vector.extract_strided_slice %1 {offsets = [2, 0], sizes = [1, 512], strides = [1, 1]} : vector<9x512xf32> to vector<1x512xf32>
    %93 = vector.broadcast %92 : vector<1x512xf32> to vector<8x512xf32>
    %94 = arith.mulf %91, %93 : vector<8x512xf32>
    %c16_41 = arith.constant 16 : index
    %c0_42 = arith.constant 0 : index
    %95 = vector.load %arg14[%c16_41, %c0_42] : memref<80x512xf32, #tpu.memory_space<vmem>>, vector<8x512xf32>
    tpu.vector_store %arg14[%c16_41, %c0_42], %94 {strides = array<i32>} : memref<80x512xf32, #tpu.memory_space<vmem>>, vector<8x512xf32>,
    %c1_i32_43 = arith.constant 1 : i32
    %96 = tpu.dynamic_rotate %79 by %c1_i32_43 dim 1 : vector<8x512xf32>, i32 -> vector<8x512xf32>
    %97 = vector.extract_strided_slice %1 {offsets = [3, 0], sizes = [1, 512], strides = [1, 1]} : vector<9x512xf32> to vector<1x512xf32>
    %98 = vector.broadcast %97 : vector<1x512xf32> to vector<8x512xf32>
    %99 = arith.mulf %96, %98 : vector<8x512xf32>
    %c24_44 = arith.constant 24 : index
    %c0_45 = arith.constant 0 : index
    %100 = vector.load %arg14[%c24_44, %c0_45] : memref<80x512xf32, #tpu.memory_space<vmem>>, vector<8x512xf32>
    tpu.vector_store %arg14[%c24_44, %c0_45], %99 {strides = array<i32>} : memref<80x512xf32, #tpu.memory_space<vmem>>, vector<8x512xf32>,
    %101 = vector.extract_strided_slice %1 {offsets = [4, 0], sizes = [1, 512], strides = [1, 1]} : vector<9x512xf32> to vector<1x512xf32>
    %102 = vector.broadcast %101 : vector<1x512xf32> to vector<8x512xf32>
    %103 = arith.mulf %79, %102 : vector<8x512xf32>
    %c32_46 = arith.constant 32 : index
    %c0_47 = arith.constant 0 : index
    %104 = vector.load %arg14[%c32_46, %c0_47] : memref<80x512xf32, #tpu.memory_space<vmem>>, vector<8x512xf32>
    tpu.vector_store %arg14[%c32_46, %c0_47], %103 {strides = array<i32>} : memref<80x512xf32, #tpu.memory_space<vmem>>, vector<8x512xf32>,
    %c511_i32_48 = arith.constant 511 : i32
    %105 = tpu.dynamic_rotate %79 by %c511_i32_48 dim 1 : vector<8x512xf32>, i32 -> vector<8x512xf32>
    %106 = vector.extract_strided_slice %1 {offsets = [5, 0], sizes = [1, 512], strides = [1, 1]} : vector<9x512xf32> to vector<1x512xf32>
    %107 = vector.broadcast %106 : vector<1x512xf32> to vector<8x512xf32>
    %108 = arith.mulf %105, %107 : vector<8x512xf32>
    %c40_49 = arith.constant 40 : index
    %c0_50 = arith.constant 0 : index
    %109 = vector.load %arg14[%c40_49, %c0_50] : memref<80x512xf32, #tpu.memory_space<vmem>>, vector<8x512xf32>
    tpu.vector_store %arg14[%c40_49, %c0_50], %108 {strides = array<i32>} : memref<80x512xf32, #tpu.memory_space<vmem>>, vector<8x512xf32>,
    %c497_i32_51 = arith.constant 497 : i32
    %110 = tpu.dynamic_rotate %79 by %c497_i32_51 dim 1 : vector<8x512xf32>, i32 -> vector<8x512xf32>
    %111 = vector.extract_strided_slice %1 {offsets = [6, 0], sizes = [1, 512], strides = [1, 1]} : vector<9x512xf32> to vector<1x512xf32>
    %112 = vector.broadcast %111 : vector<1x512xf32> to vector<8x512xf32>
    %113 = arith.mulf %110, %112 : vector<8x512xf32>
    %c48_52 = arith.constant 48 : index
    %c0_53 = arith.constant 0 : index
    %114 = vector.load %arg14[%c48_52, %c0_53] : memref<80x512xf32, #tpu.memory_space<vmem>>, vector<8x512xf32>
    tpu.vector_store %arg14[%c48_52, %c0_53], %113 {strides = array<i32>} : memref<80x512xf32, #tpu.memory_space<vmem>>, vector<8x512xf32>,
    %c496_i32_54 = arith.constant 496 : i32
    %115 = tpu.dynamic_rotate %79 by %c496_i32_54 dim 1 : vector<8x512xf32>, i32 -> vector<8x512xf32>
    %116 = vector.extract_strided_slice %1 {offsets = [7, 0], sizes = [1, 512], strides = [1, 1]} : vector<9x512xf32> to vector<1x512xf32>
    %117 = vector.broadcast %116 : vector<1x512xf32> to vector<8x512xf32>
    %118 = arith.mulf %115, %117 : vector<8x512xf32>
    %c56_55 = arith.constant 56 : index
    %c0_56 = arith.constant 0 : index
    %119 = vector.load %arg14[%c56_55, %c0_56] : memref<80x512xf32, #tpu.memory_space<vmem>>, vector<8x512xf32>
    tpu.vector_store %arg14[%c56_55, %c0_56], %118 {strides = array<i32>} : memref<80x512xf32, #tpu.memory_space<vmem>>, vector<8x512xf32>,
    %c495_i32_57 = arith.constant 495 : i32
    %120 = tpu.dynamic_rotate %79 by %c495_i32_57 dim 1 : vector<8x512xf32>, i32 -> vector<8x512xf32>
    %121 = vector.extract_strided_slice %1 {offsets = [8, 0], sizes = [1, 512], strides = [1, 1]} : vector<9x512xf32> to vector<1x512xf32>
    %122 = vector.broadcast %121 : vector<1x512xf32> to vector<8x512xf32>
    %123 = arith.mulf %120, %122 : vector<8x512xf32>
    %c64_58 = arith.constant 64 : index
    %c0_59 = arith.constant 0 : index
    %124 = vector.load %arg14[%c64_58, %c0_59] : memref<80x512xf32, #tpu.memory_space<vmem>>, vector<8x512xf32>
    tpu.vector_store %arg14[%c64_58, %c0_59], %123 {strides = array<i32>} : memref<80x512xf32, #tpu.memory_space<vmem>>, vector<8x512xf32>,
    %c0_60 = arith.constant 0 : index
    %c0_61 = arith.constant 0 : index
    %125 = vector.load %arg14[%c0_60, %c0_61] : memref<80x512xf32, #tpu.memory_space<vmem>>, vector<80x512xf32>
    %126 = arith.truncf %125 : vector<80x512xf32> to vector<80x512xbf16>
    %cst_62 = arith.constant dense<0.000000e+00> : vector<8x512xf32>
    %127 = tpu.matmul %80, %126, %cst_62 {dimension_numbers = #tpu.dot_dimension_numbers<[1], [0], [0], [1], [0, 0, 1, 1], [], []>} : vector<8x80xbf16>, vector<80x512xbf16>, vector<8x512xf32> -> vector<8x512xf32>
    %cst_63 = arith.constant dense<0.000000e+00> : vector<8x3xf32>
    %128 = tpu.matmul %127, %2, %cst_63 {dimension_numbers = #tpu.dot_dimension_numbers<[1], [0], [0], [1], [0, 0, 1, 1], [], []>} : vector<8x512xf32>, vector<512x3xf32>, vector<8x3xf32> -> vector<8x3xf32>
    %129 = arith.mulf %127, %127 : vector<8x512xf32>
    %cst_64 = arith.constant dense<0.000000e+00> : vector<8x3xf32>
    %130 = tpu.matmul %129, %2, %cst_64 {dimension_numbers = #tpu.dot_dimension_numbers<[1], [0], [0], [1], [0, 0, 1, 1], [], []>} : vector<8x512xf32>, vector<512x3xf32>, vector<8x3xf32> -> vector<8x3xf32>
    %c0_65 = arith.constant 0 : index
    %c0_66 = arith.constant 0 : index
    %131 = vector.load %arg7[%c0_65, %c0_66] : memref<8x1xf32, #tpu.memory_space<vmem>>, vector<8x1xf32>
    %c0_67 = arith.constant 0 : index
    %c0_68 = arith.constant 0 : index
    %132 = vector.load %arg8[%c0_67, %c0_68] : memref<8x1xf32, #tpu.memory_space<vmem>>, vector<8x1xf32>
    %133 = vector.extract_strided_slice %128 {offsets = [0, 2], sizes = [8, 1], strides = [1, 1]} : vector<8x3xf32> to vector<8x1xf32>
    %cst_69 = arith.constant 0.001953125 : f32
    %134 = vector.broadcast %cst_69 : f32 to vector<8x1xf32>
    %135 = arith.mulf %133, %134 : vector<8x1xf32>
    %136 = vector.extract_strided_slice %130 {offsets = [0, 2], sizes = [8, 1], strides = [1, 1]} : vector<8x3xf32> to vector<8x1xf32>
    %cst_70 = arith.constant 0.001953125 : f32
    %137 = vector.broadcast %cst_70 : f32 to vector<8x1xf32>
    %138 = arith.mulf %136, %137 : vector<8x1xf32>
    %139 = arith.mulf %135, %135 : vector<8x1xf32>
    %140 = arith.subf %138, %139 : vector<8x1xf32>
    %cst_71 = arith.constant 0.000000e+00 : f32
    %141 = vector.broadcast %cst_71 : f32 to vector<8x1xf32>
    %142 = arith.maximumf %140, %141 : vector<8x1xf32>
    %cst_72 = arith.constant 9.99999974E-6 : f32
    %143 = vector.broadcast %cst_72 : f32 to vector<8x1xf32>
    %144 = arith.addf %142, %143 : vector<8x1xf32>
    %145 = math.rsqrt %144 : vector<8x1xf32>
    %146 = arith.mulf %131, %145 : vector<8x1xf32>
    %147 = arith.mulf %135, %146 : vector<8x1xf32>
    %148 = arith.subf %132, %147 : vector<8x1xf32>
    %149 = vector.extract_strided_slice %128 {offsets = [0, 0], sizes = [8, 2], strides = [1, 1]} : vector<8x3xf32> to vector<8x2xf32>
    %cst_73 = arith.constant 3.906250e-03 : f32
    %150 = vector.broadcast %cst_73 : f32 to vector<8x2xf32>
    %151 = arith.mulf %149, %150 : vector<8x2xf32>
    %152 = vector.broadcast %146 : vector<8x1xf32> to vector<8x2xf32>
    %153 = arith.mulf %151, %152 : vector<8x2xf32>
    %154 = vector.broadcast %148 : vector<8x1xf32> to vector<8x2xf32>
    %155 = arith.addf %153, %154 : vector<8x2xf32>
    %c0_74 = arith.constant 0 : index
    %c0_75 = arith.constant 0 : index
    %156 = vector.load %arg9[%c0_74, %c0_75] : memref<8x8xf32, #tpu.memory_space<vmem>>, vector<8x8xf32>
    %cst_76 = arith.constant dense<0.000000e+00> : vector<8x2xf32>
    %157 = tpu.matmul %156, %155, %cst_76 {dimension_numbers = #tpu.dot_dimension_numbers<[1], [0], [0], [1], [0, 0, 1, 1], [], []>} : vector<8x8xf32>, vector<8x2xf32>, vector<8x2xf32> -> vector<8x2xf32>
    %c0_77 = arith.constant 0 : index
    %c0_78 = arith.constant 0 : index
    %158 = vector.load %arg10[%c0_77, %c0_78] : memref<8x1xf32, #tpu.memory_space<vmem>>, vector<8x1xf32>
    %159 = vector.broadcast %158 : vector<8x1xf32> to vector<8x2xf32>
    %160 = arith.addf %157, %159 : vector<8x2xf32>
    %cst_79 = arith.constant 0.000000e+00 : f32
    %161 = vector.broadcast %cst_79 : f32 to vector<8x2xf32>
    %162 = arith.maximumf %160, %161 : vector<8x2xf32>
    %c0_80 = arith.constant 0 : index
    %c0_81 = arith.constant 0 : index
    %163 = vector.load %arg11[%c0_80, %c0_81] : memref<8x8xf32, #tpu.memory_space<vmem>>, vector<8x8xf32>
    %cst_82 = arith.constant dense<0.000000e+00> : vector<8x2xf32>
    %164 = tpu.matmul %163, %162, %cst_82 {dimension_numbers = #tpu.dot_dimension_numbers<[1], [0], [0], [1], [0, 0, 1, 1], [], []>} : vector<8x8xf32>, vector<8x2xf32>, vector<8x2xf32> -> vector<8x2xf32>
    %c0_83 = arith.constant 0 : index
    %c0_84 = arith.constant 0 : index
    %165 = vector.load %arg12[%c0_83, %c0_84] : memref<8x1xf32, #tpu.memory_space<vmem>>, vector<8x1xf32>
    %166 = vector.broadcast %165 : vector<8x1xf32> to vector<8x2xf32>
    %167 = arith.addf %164, %166 : vector<8x2xf32>
    %168 = arith.negf %167 : vector<8x2xf32>
    %169 = math.exp %168 : vector<8x2xf32>
    %cst_85 = arith.constant 1.000000e+00 : f32
    %170 = vector.broadcast %cst_85 : f32 to vector<8x2xf32>
    %171 = arith.addf %170, %169 : vector<8x2xf32>
    %172 = arith.divf %170, %171 : vector<8x2xf32>
    %173 = vector.extract_strided_slice %127 {offsets = [0, 0], sizes = [8, 256], strides = [1, 1]} : vector<8x512xf32> to vector<8x256xf32>
    %174 = vector.broadcast %146 : vector<8x1xf32> to vector<8x256xf32>
    %175 = arith.mulf %173, %174 : vector<8x256xf32>
    %176 = vector.broadcast %148 : vector<8x1xf32> to vector<8x256xf32>
    %177 = arith.addf %175, %176 : vector<8x256xf32>
    %178 = vector.extract_strided_slice %172 {offsets = [0, 0], sizes = [8, 1], strides = [1, 1]} : vector<8x2xf32> to vector<8x1xf32>
    %179 = vector.broadcast %178 : vector<8x1xf32> to vector<8x256xf32>
    %180 = arith.mulf %177, %179 : vector<8x256xf32>
    %181 = vector.extract_strided_slice %0 {offsets = [0, 0], sizes = [8, 256], strides = [1, 1]} : vector<8x512xf32> to vector<8x256xf32>
    %182 = arith.addf %180, %181 : vector<8x256xf32>
    %c0_86 = arith.constant 0 : index
    %c0_87 = arith.constant 0 : index
    %183 = vector.load %arg13[%c0_86, %c0_87] : memref<8x512xf32, #tpu.memory_space<vmem>>, vector<8x256xf32>
    tpu.vector_store %arg13[%c0_86, %c0_87], %182 {strides = array<i32>} : memref<8x512xf32, #tpu.memory_space<vmem>>, vector<8x256xf32>,
    %184 = vector.extract_strided_slice %127 {offsets = [0, 256], sizes = [8, 256], strides = [1, 1]} : vector<8x512xf32> to vector<8x256xf32>
    %185 = vector.broadcast %146 : vector<8x1xf32> to vector<8x256xf32>
    %186 = arith.mulf %184, %185 : vector<8x256xf32>
    %187 = vector.broadcast %148 : vector<8x1xf32> to vector<8x256xf32>
    %188 = arith.addf %186, %187 : vector<8x256xf32>
    %189 = vector.extract_strided_slice %172 {offsets = [0, 1], sizes = [8, 1], strides = [1, 1]} : vector<8x2xf32> to vector<8x1xf32>
    %190 = vector.broadcast %189 : vector<8x1xf32> to vector<8x256xf32>
    %191 = arith.mulf %188, %190 : vector<8x256xf32>
    %192 = vector.extract_strided_slice %0 {offsets = [0, 256], sizes = [8, 256], strides = [1, 1]} : vector<8x512xf32> to vector<8x256xf32>
    %193 = arith.addf %191, %192 : vector<8x256xf32>
    %c0_88 = arith.constant 0 : index
    %c256 = arith.constant 256 : index
    %194 = vector.load %arg13[%c0_88, %c256] : memref<8x512xf32, #tpu.memory_space<vmem>>, vector<8x256xf32>
    tpu.vector_store %arg13[%c0_88, %c256], %193 {strides = array<i32>} : memref<8x512xf32, #tpu.memory_space<vmem>>, vector<8x256xf32>,
    return
  }
}

</mosaic_0001>

<llo_original>
// kernel: tpu_custom_call.1
$region0: #{tpu_custom_call.1}
  #allocation0 [shape = 'u32[]', space=smem, size = 0x4, offset = 0x4, fixed_abs, tag = 'smem constant byte address 0x4 - core index']
  #allocation1 [shape = 'u32[144,128]{1,0:T(1,128)}', space=vmem, size = 0x12000, scoped, tag = 'internal scratch']
  #allocation2 [shape = 'f32[80,512]{1,0:T(8,128)}', space=vmem, size = 0x28000, scoped, tag = 'scratch operand']
  %s0 = inlined_call_operand.vmem [shape: f32[8,512], index: 0, kind: input, shape index: {}]
  %s1 = inlined_call_operand.vmem [shape: f32[9,512], index: 1, kind: input, shape index: {}]
  %s2 = inlined_call_operand.vmem [shape: f32[512,3], index: 2, kind: input, shape index: {}]
  %s3 = inlined_call_operand.vmem [shape: bf16[8,80], index: 3, kind: input, shape index: {}]
  %s4 = inlined_call_operand.vmem [shape: f32[8,1], index: 4, kind: input, shape index: {}]
  %s5 = inlined_call_operand.vmem [shape: f32[8,1], index: 5, kind: input, shape index: {}]
  %s6 = inlined_call_operand.vmem [shape: bf16[8,80], index: 6, kind: input, shape index: {}]
  %s7 = inlined_call_operand.vmem [shape: f32[8,1], index: 7, kind: input, shape index: {}]
  %s8 = inlined_call_operand.vmem [shape: f32[8,1], index: 8, kind: input, shape index: {}]
  %s9 = inlined_call_operand.vmem [shape: f32[8,8], index: 9, kind: input, shape index: {}]
  %s10 = inlined_call_operand.vmem [shape: f32[8,1], index: 10, kind: input, shape index: {}]
  %s11 = inlined_call_operand.vmem [shape: f32[8,8], index: 11, kind: input, shape index: {}]
  %s12 = inlined_call_operand.vmem [shape: f32[8,1], index: 12, kind: input, shape index: {}]
  %s13 = inlined_call_operand.hbm [shape: f32[8,512], index: 13, kind: output, shape index: {}]
  %s14 = sld [smem:[#allocation0]]
  $region62: #{tpu_custom_call.1} parent=0
    _
  %s16 = ssub.s32 1, %s14
  %s17 = scalar_select 0, %s16, %s14
  $region1: #{tpu_custom_call.1} parent=0
    #allocation3 [shape = 'u8[16384]{0}', space=vmem, size = 0x4000, scoped, tag = 'output window, operand 0, single buffered']
    #allocation4 [shape = 's32[1]{0}', space=sflag, size = 0x4, scoped, tag = 'scoped memory for tpu_custom_call.1']
    %18 = vsyncpa [#allocation4], 0
    // Predicated region
    $region2: #{tpu_custom_call.1} parent=1 // pred_check
      _
    $region3: #{tpu_custom_call.1} parent=1 // pred_check_branch
      %20 = sbr.rel (0) target = $region5
    $region4: #{tpu_custom_call.1} parent=1 // pred_region
      _
    $region5: #{tpu_custom_call.1} parent=1 // pred_fallthru
      _
    // Predicated region
    $region6: #{tpu_custom_call.1} parent=1 // pred_check
      _
    $region7: #{tpu_custom_call.1} parent=1 // pred_check_branch
      %22 = sbr.rel (0) target = $region9
    $region8: #{tpu_custom_call.1} parent=1 // pred_region
      _
    $region9: #{tpu_custom_call.1} parent=1 // pred_fallthru
      _
    // Predicated region
    $region10: #{tpu_custom_call.1} parent=1 // pred_check
      _
    $region11: #{tpu_custom_call.1} parent=1 // pred_check_branch
      %24 = sbr.rel (0) target = $region13
    $region12: #{tpu_custom_call.1} parent=1 // pred_region
      _
    $region13: #{tpu_custom_call.1} parent=1 // pred_fallthru
      _
    // Predicated region
    $region14: #{tpu_custom_call.1} parent=1 // pred_check
      _
    $region15: #{tpu_custom_call.1} parent=1 // pred_check_branch
      %26 = sbr.rel (0) target = $region17
    $region16: #{tpu_custom_call.1} parent=1 // pred_region
      _
    $region17: #{tpu_custom_call.1} parent=1 // pred_fallthru
      _
    // Predicated region
    $region18: #{tpu_custom_call.1} parent=1 // pred_check
      _
    $region19: #{tpu_custom_call.1} parent=1 // pred_check_branch
      %28 = sbr.rel (0) target = $region21
    $region20: #{tpu_custom_call.1} parent=1 // pred_region
      _
    $region21: #{tpu_custom_call.1} parent=1 // pred_fallthru
      _
    // Predicated region
    $region22: #{tpu_custom_call.1} parent=1 // pred_check
      _
    $region23: #{tpu_custom_call.1} parent=1 // pred_check_branch
      %30 = sbr.rel (0) target = $region25
    $region24: #{tpu_custom_call.1} parent=1 // pred_region
      _
    $region25: #{tpu_custom_call.1} parent=1 // pred_fallthru
      _
    // Predicated region
    $region26: #{tpu_custom_call.1} parent=1 // pred_check
      _
    $region27: #{tpu_custom_call.1} parent=1 // pred_check_branch
      %32 = sbr.rel (0) target = $region29
    $region28: #{tpu_custom_call.1} parent=1 // pred_region
      _
    $region29: #{tpu_custom_call.1} parent=1 // pred_fallthru
      _
    // Predicated region
    $region30: #{tpu_custom_call.1} parent=1 // pred_check
      _
    $region31: #{tpu_custom_call.1} parent=1 // pred_check_branch
      %34 = sbr.rel (0) target = $region33
    $region32: #{tpu_custom_call.1} parent=1 // pred_region
      _
    $region33: #{tpu_custom_call.1} parent=1 // pred_fallthru
      _
    // Predicated region
    $region34: #{tpu_custom_call.1} parent=1 // pred_check
      _
    $region35: #{tpu_custom_call.1} parent=1 // pred_check_branch
      %36 = sbr.rel (0) target = $region37
    $region36: #{tpu_custom_call.1} parent=1 // pred_region
      _
    $region37: #{tpu_custom_call.1} parent=1 // pred_fallthru
      _
    // Predicated region
    $region38: #{tpu_custom_call.1} parent=1 // pred_check
      _
    $region39: #{tpu_custom_call.1} parent=1 // pred_check_branch
      %38 = sbr.rel (0) target = $region41
    $region40: #{tpu_custom_call.1} parent=1 // pred_region
      _
    $region41: #{tpu_custom_call.1} parent=1 // pred_fallthru
      _
    // Predicated region
    $region42: #{tpu_custom_call.1} parent=1 // pred_check
      _
    $region43: #{tpu_custom_call.1} parent=1 // pred_check_branch
      %40 = sbr.rel (0) target = $region45
    $region44: #{tpu_custom_call.1} parent=1 // pred_region
      _
    $region45: #{tpu_custom_call.1} parent=1 // pred_fallthru
      _
    // Predicated region
    $region46: #{tpu_custom_call.1} parent=1 // pred_check
      _
    $region47: #{tpu_custom_call.1} parent=1 // pred_check_branch
      %42 = sbr.rel (0) target = $region49
    $region48: #{tpu_custom_call.1} parent=1 // pred_region
      _
    $region49: #{tpu_custom_call.1} parent=1 // pred_fallthru
      _
    // Predicated region
    $region50: #{tpu_custom_call.1} parent=1 // pred_check
      _
    $region51: #{tpu_custom_call.1} parent=1 // pred_check_branch
      %44 = sbr.rel (0) target = $region53
    $region52: #{tpu_custom_call.1} parent=1 // pred_region
      _
    $region53: #{tpu_custom_call.1} parent=1 // pred_fallthru
      _
    %v46 = vld [vmem:[%s0] sm:$0xff]
    %v47 = vld [vmem:[%s0 + $0x8] sm:$0xff]
    %v48 = vld [vmem:[%s0 + $0x10] sm:$0xff]
    %v49 = vld [vmem:[%s0 + $0x18] sm:$0xff]
    %v50 = vld [vmem:[%s1] sm:$0xff]
    %v51 = vld [vmem:[%s1 + $0x8] sm:$0xff]
    %v52 = vld [vmem:[%s1 + $0x10] sm:$0xff]
    %v53 = vld [vmem:[%s1 + $0x18] sm:$0xff]
    %v54 = vld [vmem:[%s1 + $0x20] sm:$0x1]
    %v55 = vld [vmem:[%s1 + $0x28] sm:$0x1]
    %v56 = vld [vmem:[%s1 + $0x30] sm:$0x1]
    %v57 = vld [vmem:[%s1 + $0x38] sm:$0x1]
    %v58 = vld [vmem:[%s2] sm:$0xff]
    %v59 = vld [vmem:[%s2 + $0x8] sm:$0xff]
    %v60 = vld [vmem:[%s2 + $0x10] sm:$0xff]
    %v61 = vld [vmem:[%s2 + $0x18] sm:$0xff]
    %v62 = vld [vmem:[%s2 + $0x20] sm:$0xff]
    %v63 = vld [vmem:[%s2 + $0x28] sm:$0xff]
    %v64 = vld [vmem:[%s2 + $0x30] sm:$0xff]
    %v65 = vld [vmem:[%s2 + $0x38] sm:$0xff]
    %v66 = vld [vmem:[%s2 + $0x40] sm:$0xff]
    %v67 = vld [vmem:[%s2 + $0x48] sm:$0xff]
    %v68 = vld [vmem:[%s2 + $0x50] sm:$0xff]
    %v69 = vld [vmem:[%s2 + $0x58] sm:$0xff]
    %v70 = vld [vmem:[%s2 + $0x60] sm:$0xff]
    %v71 = vld [vmem:[%s2 + $0x68] sm:$0xff]
    %v72 = vld [vmem:[%s2 + $0x70] sm:$0xff]
    %v73 = vld [vmem:[%s2 + $0x78] sm:$0xff]
    %v74 = vld [vmem:[%s2 + $0x80] sm:$0xff]
    %v75 = vld [vmem:[%s2 + $0x88] sm:$0xff]
    %v76 = vld [vmem:[%s2 + $0x90] sm:$0xff]
    %v77 = vld [vmem:[%s2 + $0x98] sm:$0xff]
    %v78 = vld [vmem:[%s2 + $0xa0] sm:$0xff]
    %v79 = vld [vmem:[%s2 + $0xa8] sm:$0xff]
    %v80 = vld [vmem:[%s2 + $0xb0] sm:$0xff]
    %v81 = vld [vmem:[%s2 + $0xb8] sm:$0xff]
    %v82 = vld [vmem:[%s2 + $0xc0] sm:$0xff]
    %v83 = vld [vmem:[%s2 + $0xc8] sm:$0xff]
    %v84 = vld [vmem:[%s2 + $0xd0] sm:$0xff]
    %v85 = vld [vmem:[%s2 + $0xd8] sm:$0xff]
    %v86 = vld [vmem:[%s2 + $0xe0] sm:$0xff]
    %v87 = vld [vmem:[%s2 + $0xe8] sm:$0xff]
    %v88 = vld [vmem:[%s2 + $0xf0] sm:$0xff]
    %v89 = vld [vmem:[%s2 + $0xf8] sm:$0xff]
    %v90 = vld [vmem:[%s2 + $0x100] sm:$0xff]
    %v91 = vld [vmem:[%s2 + $0x108] sm:$0xff]
    %v92 = vld [vmem:[%s2 + $0x110] sm:$0xff]
    %v93 = vld [vmem:[%s2 + $0x118] sm:$0xff]
    %v94 = vld [vmem:[%s2 + $0x120] sm:$0xff]
    %v95 = vld [vmem:[%s2 + $0x128] sm:$0xff]
    %v96 = vld [vmem:[%s2 + $0x130] sm:$0xff]
    %v97 = vld [vmem:[%s2 + $0x138] sm:$0xff]
    %v98 = vld [vmem:[%s2 + $0x140] sm:$0xff]
    %v99 = vld [vmem:[%s2 + $0x148] sm:$0xff]
    %v100 = vld [vmem:[%s2 + $0x150] sm:$0xff]
    %v101 = vld [vmem:[%s2 + $0x158] sm:$0xff]
    %v102 = vld [vmem:[%s2 + $0x160] sm:$0xff]
    %v103 = vld [vmem:[%s2 + $0x168] sm:$0xff]
    %v104 = vld [vmem:[%s2 + $0x170] sm:$0xff]
    %v105 = vld [vmem:[%s2 + $0x178] sm:$0xff]
    %v106 = vld [vmem:[%s2 + $0x180] sm:$0xff]
    %v107 = vld [vmem:[%s2 + $0x188] sm:$0xff]
    %v108 = vld [vmem:[%s2 + $0x190] sm:$0xff]
    %v109 = vld [vmem:[%s2 + $0x198] sm:$0xff]
    %v110 = vld [vmem:[%s2 + $0x1a0] sm:$0xff]
    %v111 = vld [vmem:[%s2 + $0x1a8] sm:$0xff]
    %v112 = vld [vmem:[%s2 + $0x1b0] sm:$0xff]
    %v113 = vld [vmem:[%s2 + $0x1b8] sm:$0xff]
    %v114 = vld [vmem:[%s2 + $0x1c0] sm:$0xff]
    %v115 = vld [vmem:[%s2 + $0x1c8] sm:$0xff]
    %v116 = vld [vmem:[%s2 + $0x1d0] sm:$0xff]
    %v117 = vld [vmem:[%s2 + $0x1d8] sm:$0xff]
    %v118 = vld [vmem:[%s2 + $0x1e0] sm:$0xff]
    %v119 = vld [vmem:[%s2 + $0x1e8] sm:$0xff]
    %v120 = vld [vmem:[%s2 + $0x1f0] sm:$0xff]
    %v121 = vld [vmem:[%s2 + $0x1f8] sm:$0xff]
    %122 = vst [vmem:[#allocation2 + $0x120] sm:$0xff] 0.0
    %123 = vst [vmem:[#allocation2 + $0x128] sm:$0xff] 0.0
    %124 = vst [vmem:[#allocation2 + $0x130] sm:$0xff] 0.0
    %125 = vst [vmem:[#allocation2 + $0x138] sm:$0xff] 0.0
    %v126 = vld [vmem:[%s3] sm:$0xf]
    %127 = vrot.lane.b32.xlu0 %v46, 17
    %v128 = vpop.permute.xlu0 %127
    %129 = vrot.lane.b32.xlu0 %v47, 17
    %v130 = vpop.permute.xlu0 %129
    %131 = vrot.lane.b32.xlu0 %v48, 17
    %v132 = vpop.permute.xlu0 %131
    %133 = vrot.lane.b32.xlu0 %v49, 17
    %v134 = vpop.permute.xlu0 %133
    %v135 = vlaneseq
    %v136 = vand.u32 %v135, 127
    %vm137 = vcmp.lt.s32.totalorder %v136, 17
    %v138 = vsel %vm137, %v132, %v134
    %v139 = vsel %vm137, %v130, %v132
    %v140 = vsel %vm137, %v128, %v130
    %v141 = vsel %vm137, %v134, %v128
    %v142 = vlaneseq
    %v143 = vshrl.u32 %v142, 7
    %v144 = vsub.s32 0, %v143
    %v145 = vrot.slane %v50, %v144
    %v146 = vlaneseq
    %v147 = vshrl.u32 %v146, 7
    %v148 = vsub.s32 0, %v147
    %v149 = vrot.slane %v51, %v148
    %v150 = vlaneseq
    %v151 = vshrl.u32 %v150, 7
    %v152 = vsub.s32 0, %v151
    %v153 = vrot.slane %v52, %v152
    %v154 = vlaneseq
    %v155 = vshrl.u32 %v154, 7
    %v156 = vsub.s32 0, %v155
    %v157 = vrot.slane %v53, %v156
    %v158 = vmul.f32 %v141, %v145
    %v159 = vmul.f32 %v140, %v149
    %v160 = vmul.f32 %v139, %v153
    %v161 = vmul.f32 %v138, %v157
    %162 = vst [vmem:[#allocation2] sm:$0xff] %v158
    %163 = vst [vmem:[#allocation2 + $0x8] sm:$0xff] %v159
    %164 = vst [vmem:[#allocation2 + $0x10] sm:$0xff] %v160
    %165 = vst [vmem:[#allocation2 + $0x18] sm:$0xff] %v161
    %166 = vrot.lane.b32.xlu0 %v46, 16
    %v167 = vpop.permute.xlu0 %166
    %168 = vrot.lane.b32.xlu0 %v47, 16
    %v169 = vpop.permute.xlu0 %168
    %170 = vrot.lane.b32.xlu0 %v48, 16
    %v171 = vpop.permute.xlu0 %170
    %172 = vrot.lane.b32.xlu0 %v49, 16
    %v173 = vpop.permute.xlu0 %172
    %vm174 = vcmp.lt.s32.totalorder %v136, 16
    %v175 = vsel %vm174, %v171, %v173
    %v176 = vsel %vm174, %v169, %v171
    %v177 = vsel %vm174, %v167, %v169
    %v178 = vsel %vm174, %v173, %v167
    %v179 = vlaneseq
    %v180 = vshrl.u32 %v179, 7
    %v181 = vsub.s32 1, %v180
    %v182 = vrot.slane %v50, %v181
    %v183 = vlaneseq
    %v184 = vshrl.u32 %v183, 7
    %v185 = vsub.s32 1, %v184
    %v186 = vrot.slane %v51, %v185
    %v187 = vlaneseq
    %v188 = vshrl.u32 %v187, 7
    %v189 = vsub.s32 1, %v188
    %v190 = vrot.slane %v52, %v189
    %v191 = vlaneseq
    %v192 = vshrl.u32 %v191, 7
    %v193 = vsub.s32 1, %v192
    %v194 = vrot.slane %v53, %v193
    %v195 = vmul.f32 %v178, %v182
    %v196 = vmul.f32 %v177, %v186
    %v197 = vmul.f32 %v176, %v190
    %v198 = vmul.f32 %v175, %v194
    %199 = vst [vmem:[#allocation2 + $0x20] sm:$0xff] %v195
    %200 = vst [vmem:[#allocation2 + $0x28] sm:$0xff] %v196
    %201 = vst [vmem:[#allocation2 + $0x30] sm:$0xff] %v197
    %202 = vst [vmem:[#allocation2 + $0x38] sm:$0xff] %v198
    %203 = vrot.lane.b32.xlu0 %v46, 15
    %v204 = vpop.permute.xlu0 %203
    %205 = vrot.lane.b32.xlu0 %v47, 15
    %v206 = vpop.permute.xlu0 %205
    %207 = vrot.lane.b32.xlu0 %v48, 15
    %v208 = vpop.permute.xlu0 %207
    %209 = vrot.lane.b32.xlu0 %v49, 15
    %v210 = vpop.permute.xlu0 %209
    %vm211 = vcmp.lt.s32.totalorder %v136, 15
    %v212 = vsel %vm211, %v208, %v210
    %v213 = vsel %vm211, %v206, %v208
    %v214 = vsel %vm211, %v204, %v206
    %v215 = vsel %vm211, %v210, %v204
    %v216 = vlaneseq
    %v217 = vshrl.u32 %v216, 7
    %v218 = vsub.s32 2, %v217
    %v219 = vrot.slane %v50, %v218
    %v220 = vlaneseq
    %v221 = vshrl.u32 %v220, 7
    %v222 = vsub.s32 2, %v221
    %v223 = vrot.slane %v51, %v222
    %v224 = vlaneseq
    %v225 = vshrl.u32 %v224, 7
    %v226 = vsub.s32 2, %v225
    %v227 = vrot.slane %v52, %v226
    %v228 = vlaneseq
    %v229 = vshrl.u32 %v228, 7
    %v230 = vsub.s32 2, %v229
    %v231 = vrot.slane %v53, %v230
    %v232 = vmul.f32 %v215, %v219
    %v233 = vmul.f32 %v214, %v223
    %v234 = vmul.f32 %v213, %v227
    %v235 = vmul.f32 %v212, %v231
    %236 = vst [vmem:[#allocation2 + $0x40] sm:$0xff] %v232
    %237 = vst [vmem:[#allocation2 + $0x48] sm:$0xff] %v233
    %238 = vst [vmem:[#allocation2 + $0x50] sm:$0xff] %v234
    %239 = vst [vmem:[#allocation2 + $0x58] sm:$0xff] %v235
    %240 = vrot.lane.b32.xlu0 %v46, 1
    %v241 = vpop.permute.xlu0 %240
    %242 = vrot.lane.b32.xlu0 %v47, 1
    %v243 = vpop.permute.xlu0 %242
    %244 = vrot.lane.b32.xlu0 %v48, 1
    %v245 = vpop.permute.xlu0 %244
    %246 = vrot.lane.b32.xlu0 %v49, 1
    %v247 = vpop.permute.xlu0 %246
    %vm248 = vcmp.lt.s32.totalorder %v136, 1
    %v249 = vsel %vm248, %v245, %v247
    %v250 = vsel %vm248, %v243, %v245
    %v251 = vsel %vm248, %v241, %v243
    %v252 = vsel %vm248, %v247, %v241
    %v253 = vlaneseq
    %v254 = vshrl.u32 %v253, 7
    %v255 = vsub.s32 3, %v254
    %v256 = vrot.slane %v50, %v255
    %v257 = vlaneseq
    %v258 = vshrl.u32 %v257, 7
    %v259 = vsub.s32 3, %v258
    %v260 = vrot.slane %v51, %v259
    %v261 = vlaneseq
    %v262 = vshrl.u32 %v261, 7
    %v263 = vsub.s32 3, %v262
    %v264 = vrot.slane %v52, %v263
    %v265 = vlaneseq
    %v266 = vshrl.u32 %v265, 7
    %v267 = vsub.s32 3, %v266
    %v268 = vrot.slane %v53, %v267
    %v269 = vmul.f32 %v252, %v256
    %v270 = vmul.f32 %v251, %v260
    %v271 = vmul.f32 %v250, %v264
    %v272 = vmul.f32 %v249, %v268
    %273 = vst [vmem:[#allocation2 + $0x60] sm:$0xff] %v269
    %274 = vst [vmem:[#allocation2 + $0x68] sm:$0xff] %v270
    %275 = vst [vmem:[#allocation2 + $0x70] sm:$0xff] %v271
    %276 = vst [vmem:[#allocation2 + $0x78] sm:$0xff] %v272
    %v277 = vlaneseq
    %v278 = vshrl.u32 %v277, 7
    %v279 = vsub.s32 4, %v278
    %v280 = vrot.slane %v50, %v279
    %v281 = vlaneseq
    %v282 = vshrl.u32 %v281, 7
    %v283 = vsub.s32 4, %v282
    %v284 = vrot.slane %v51, %v283
    %v285 = vlaneseq
    %v286 = vshrl.u32 %v285, 7
    %v287 = vsub.s32 4, %v286
    %v288 = vrot.slane %v52, %v287
    %v289 = vlaneseq
    %v290 = vshrl.u32 %v289, 7
    %v291 = vsub.s32 4, %v290
    %v292 = vrot.slane %v53, %v291
    %v293 = vmul.f32 %v46, %v280
    %v294 = vmul.f32 %v47, %v284
    %v295 = vmul.f32 %v48, %v288
    %v296 = vmul.f32 %v49, %v292
    %297 = vst [vmem:[#allocation2 + $0x80] sm:$0xff] %v293
    %298 = vst [vmem:[#allocation2 + $0x88] sm:$0xff] %v294
    %299 = vst [vmem:[#allocation2 + $0x90] sm:$0xff] %v295
    %300 = vst [vmem:[#allocation2 + $0x98] sm:$0xff] %v296
    %301 = vrot.lane.b32.xlu0 %v46, 127
    %v302 = vpop.permute.xlu0 %301
    %303 = vrot.lane.b32.xlu0 %v47, 127
    %v304 = vpop.permute.xlu0 %303
    %305 = vrot.lane.b32.xlu0 %v48, 127
    %v306 = vpop.permute.xlu0 %305
    %307 = vrot.lane.b32.xlu0 %v49, 127
    %v308 = vpop.permute.xlu0 %307
    %vm309 = vcmp.lt.s32.totalorder %v136, 127
    %v310 = vsel %vm309, %v306, %v308
    %v311 = vsel %vm309, %v304, %v306
    %v312 = vsel %vm309, %v302, %v304
    %v313 = vsel %vm309, %v308, %v302
    %v314 = vlaneseq
    %v315 = vshrl.u32 %v314, 7
    %v316 = vsub.s32 5, %v315
    %v317 = vrot.slane %v50, %v316
    %v318 = vlaneseq
    %v319 = vshrl.u32 %v318, 7
    %v320 = vsub.s32 5, %v319
    %v321 = vrot.slane %v51, %v320
    %v322 = vlaneseq
    %v323 = vshrl.u32 %v322, 7
    %v324 = vsub.s32 5, %v323
    %v325 = vrot.slane %v52, %v324
    %v326 = vlaneseq
    %v327 = vshrl.u32 %v326, 7
    %v328 = vsub.s32 5, %v327
    %v329 = vrot.slane %v53, %v328
    %v330 = vmul.f32 %v312, %v317
    %v331 = vmul.f32 %v311, %v321
    %v332 = vmul.f32 %v310, %v325
    %v333 = vmul.f32 %v313, %v329
    %334 = vst [vmem:[#allocation2 + $0xa0] sm:$0xff] %v330
    %335 = vst [vmem:[#allocation2 + $0xa8] sm:$0xff] %v331
    %336 = vst [vmem:[#allocation2 + $0xb0] sm:$0xff] %v332
    %337 = vst [vmem:[#allocation2 + $0xb8] sm:$0xff] %v333
    %338 = vrot.lane.b32.xlu0 %v46, 113
    %v339 = vpop.permute.xlu0 %338
    %340 = vrot.lane.b32.xlu0 %v47, 113
    %v341 = vpop.permute.xlu0 %340
    %342 = vrot.lane.b32.xlu0 %v48, 113
    %v343 = vpop.permute.xlu0 %342
    %344 = vrot.lane.b32.xlu0 %v49, 113
    %v345 = vpop.permute.xlu0 %344
    %vm346 = vcmp.lt.s32.totalorder %v136, 113
    %v347 = vsel %vm346, %v343, %v345
    %v348 = vsel %vm346, %v341, %v343
    %v349 = vsel %vm346, %v339, %v341
    %v350 = vsel %vm346, %v345, %v339
    %v351 = vlaneseq
    %v352 = vshrl.u32 %v351, 7
    %v353 = vsub.s32 6, %v352
    %v354 = vrot.slane %v50, %v353
    %v355 = vlaneseq
    %v356 = vshrl.u32 %v355, 7
    %v357 = vsub.s32 6, %v356
    %v358 = vrot.slane %v51, %v357
    %v359 = vlaneseq
    %v360 = vshrl.u32 %v359, 7
    %v361 = vsub.s32 6, %v360
    %v362 = vrot.slane %v52, %v361
    %v363 = vlaneseq
    %v364 = vshrl.u32 %v363, 7
    %v365 = vsub.s32 6, %v364
    %v366 = vrot.slane %v53, %v365
    %v367 = vmul.f32 %v349, %v354
    %v368 = vmul.f32 %v348, %v358
    %v369 = vmul.f32 %v347, %v362
    %v370 = vmul.f32 %v350, %v366
    %371 = vst [vmem:[#allocation2 + $0xc0] sm:$0xff] %v367
    %372 = vst [vmem:[#allocation2 + $0xc8] sm:$0xff] %v368
    %373 = vst [vmem:[#allocation2 + $0xd0] sm:$0xff] %v369
    %374 = vst [vmem:[#allocation2 + $0xd8] sm:$0xff] %v370
    %375 = vrot.lane.b32.xlu0 %v46, 112
    %v376 = vpop.permute.xlu0 %375
    %377 = vrot.lane.b32.xlu0 %v47, 112
    %v378 = vpop.permute.xlu0 %377
    %379 = vrot.lane.b32.xlu0 %v48, 112
    %v380 = vpop.permute.xlu0 %379
    %381 = vrot.lane.b32.xlu0 %v49, 112
    %v382 = vpop.permute.xlu0 %381
    %vm383 = vcmp.lt.s32.totalorder %v136, 112
    %v384 = vsel %vm383, %v380, %v382
    %v385 = vsel %vm383, %v378, %v380
    %v386 = vsel %vm383, %v376, %v378
    %v387 = vsel %vm383, %v382, %v376
    %v388 = vlaneseq
    %v389 = vshrl.u32 %v388, 7
    %v390 = vsub.s32 7, %v389
    %v391 = vrot.slane %v50, %v390
    %v392 = vlaneseq
    %v393 = vshrl.u32 %v392, 7
    %v394 = vsub.s32 7, %v393
    %v395 = vrot.slane %v51, %v394
    %v396 = vlaneseq
    %v397 = vshrl.u32 %v396, 7
    %v398 = vsub.s32 7, %v397
    %v399 = vrot.slane %v52, %v398
    %v400 = vlaneseq
    %v401 = vshrl.u32 %v400, 7
    %v402 = vsub.s32 7, %v401
    %v403 = vrot.slane %v53, %v402
    %v404 = vmul.f32 %v386, %v391
    %v405 = vmul.f32 %v385, %v395
    %v406 = vmul.f32 %v384, %v399
    %v407 = vmul.f32 %v387, %v403
    %408 = vst [vmem:[#allocation2 + $0xe0] sm:$0xff] %v404
    %409 = vst [vmem:[#allocation2 + $0xe8] sm:$0xff] %v405
    %410 = vst [vmem:[#allocation2 + $0xf0] sm:$0xff] %v406
    %411 = vst [vmem:[#allocation2 + $0xf8] sm:$0xff] %v407
    %412 = vrot.lane.b32.xlu0 %v46, 111
    %v413 = vpop.permute.xlu0 %412
    %414 = vrot.lane.b32.xlu0 %v47, 111
    %v415 = vpop.permute.xlu0 %414
    %416 = vrot.lane.b32.xlu0 %v48, 111
    %v417 = vpop.permute.xlu0 %416
    %418 = vrot.lane.b32.xlu0 %v49, 111
    %v419 = vpop.permute.xlu0 %418
    %vm420 = vcmp.lt.s32.totalorder %v136, 111
    %v421 = vsel %vm420, %v417, %v419
    %v422 = vsel %vm420, %v415, %v417
    %v423 = vsel %vm420, %v413, %v415
    %v424 = vsel %vm420, %v419, %v413
    %v425 = vlaneseq
    %v426 = vshrl.u32 %v425, 7
    %v427 = vsub.s32 0, %v426
    %v428 = vrot.slane %v54, %v427
    %v429 = vlaneseq
    %v430 = vshrl.u32 %v429, 7
    %v431 = vsub.s32 0, %v430
    %v432 = vrot.slane %v55, %v431
    %v433 = vlaneseq
    %v434 = vshrl.u32 %v433, 7
    %v435 = vsub.s32 0, %v434
    %v436 = vrot.slane %v56, %v435
    %v437 = vlaneseq
    %v438 = vshrl.u32 %v437, 7
    %v439 = vsub.s32 0, %v438
    %v440 = vrot.slane %v57, %v439
    %v441 = vmul.f32 %v423, %v428
    %v442 = vmul.f32 %v422, %v432
    %v443 = vmul.f32 %v421, %v436
    %v444 = vmul.f32 %v424, %v440
    %445 = vst [vmem:[#allocation2 + $0x100] sm:$0xff] %v441
    %446 = vst [vmem:[#allocation2 + $0x108] sm:$0xff] %v442
    %447 = vst [vmem:[#allocation2 + $0x110] sm:$0xff] %v443
    %448 = vst [vmem:[#allocation2 + $0x118] sm:$0xff] %v444
    %v449 = vld [vmem:[#allocation2] sm:$0xff]
    %v450 = vld [vmem:[#allocation2 + $0x8] sm:$0xff]
    %v451 = vld [vmem:[#allocation2 + $0x10] sm:$0xff]
    %v452 = vld [vmem:[#allocation2 + $0x18] sm:$0xff]
    %v453 = vld [vmem:[#allocation2 + $0x20] sm:$0xff]
    %v454 = vld [vmem:[#allocation2 + $0x28] sm:$0xff]
    %v455 = vld [vmem:[#allocation2 + $0x30] sm:$0xff]
    %v456 = vld [vmem:[#allocation2 + $0x38] sm:$0xff]
    %v457 = vld [vmem:[#allocation2 + $0x40] sm:$0xff]
    %v458 = vld [vmem:[#allocation2 + $0x48] sm:$0xff]
    %v459 = vld [vmem:[#allocation2 + $0x50] sm:$0xff]
    %v460 = vld [vmem:[#allocation2 + $0x58] sm:$0xff]
    %v461 = vld [vmem:[#allocation2 + $0x60] sm:$0xff]
    %v462 = vld [vmem:[#allocation2 + $0x68] sm:$0xff]
    %v463 = vld [vmem:[#allocation2 + $0x70] sm:$0xff]
    %v464 = vld [vmem:[#allocation2 + $0x78] sm:$0xff]
    %v465 = vld [vmem:[#allocation2 + $0x80] sm:$0xff]
    %v466 = vld [vmem:[#allocation2 + $0x88] sm:$0xff]
    %v467 = vld [vmem:[#allocation2 + $0x90] sm:$0xff]
    %v468 = vld [vmem:[#allocation2 + $0x98] sm:$0xff]
    %v469 = vld [vmem:[#allocation2 + $0xa0] sm:$0xff]
    %v470 = vld [vmem:[#allocation2 + $0xa8] sm:$0xff]
    %v471 = vld [vmem:[#allocation2 + $0xb0] sm:$0xff]
    %v472 = vld [vmem:[#allocation2 + $0xb8] sm:$0xff]
    %v473 = vld [vmem:[#allocation2 + $0xc0] sm:$0xff]
    %v474 = vld [vmem:[#allocation2 + $0xc8] sm:$0xff]
    %v475 = vld [vmem:[#allocation2 + $0xd0] sm:$0xff]
    %v476 = vld [vmem:[#allocation2 + $0xd8] sm:$0xff]
    %v477 = vld [vmem:[#allocation2 + $0xe0] sm:$0xff]
    %v478 = vld [vmem:[#allocation2 + $0xe8] sm:$0xff]
    %v479 = vld [vmem:[#allocation2 + $0xf0] sm:$0xff]
    %v480 = vld [vmem:[#allocation2 + $0xf8] sm:$0xff]
    %v481 = vld [vmem:[#allocation2 + $0x100] sm:$0xff]
    %v482 = vld [vmem:[#allocation2 + $0x108] sm:$0xff]
    %v483 = vld [vmem:[#allocation2 + $0x110] sm:$0xff]
    %v484 = vld [vmem:[#allocation2 + $0x118] sm:$0xff]
    %v485 = vld [vmem:[#allocation2 + $0x120] sm:$0xff]
    %v486 = vld [vmem:[#allocation2 + $0x128] sm:$0xff]
    %v487 = vld [vmem:[#allocation2 + $0x130] sm:$0xff]
    %v488 = vld [vmem:[#allocation2 + $0x138] sm:$0xff]
    %v489 = vpack.c.bf16 %v453, %v449
    %v490 = vpack.c.bf16 %v454, %v450
    %v491 = vpack.c.bf16 %v455, %v451
    %v492 = vpack.c.bf16 %v456, %v452
    %v493 = vpack.c.bf16 %v461, %v457
    %v494 = vpack.c.bf16 %v462, %v458
    %v495 = vpack.c.bf16 %v463, %v459
    %v496 = vpack.c.bf16 %v464, %v460
    %v497 = vpack.c.bf16 %v469, %v465
    %v498 = vpack.c.bf16 %v470, %v466
    %v499 = vpack.c.bf16 %v471, %v467
    %v500 = vpack.c.bf16 %v472, %v468
    %v501 = vpack.c.bf16 %v477, %v473
    %v502 = vpack.c.bf16 %v478, %v474
    %v503 = vpack.c.bf16 %v479, %v475
    %v504 = vpack.c.bf16 %v480, %v476
    %v505 = vpack.c.bf16 %v485, %v481
    %v506 = vpack.c.bf16 %v486, %v482
    %v507 = vpack.c.bf16 %v487, %v483
    %v508 = vpack.c.bf16 %v488, %v484
    %vm509 = vcmask 654336
    %v511 = vsel %vm509, %v126, 0
    %513 = vmatprep.subr.bf16.mxu0 0
    %514 = vmatpush1.bf16.msra.mxu0 0
    %515 = vmatprep.subr.bf16.mxu0 0
    %516 = vmatpush1.bf16.msra.mxu0 0
    %517 = vmatprep.subr.bf16.mxu0 0
    %518 = vmatpush1.bf16.msra.mxu0 0
    %519 = vmatprep.subr.bf16.mxu0 %v506
    %520 = vmatpush1.bf16.msra.mxu0 %v505
    %521 = vmatprep.subr.bf16.mxu0 %v502
    %522 = vmatpush1.bf16.msra.mxu0 %v501
    %523 = vmatprep.subr.bf16.mxu0 %v498
    %524 = vmatpush1.bf16.msra.mxu0 %v497
    %525 = vmatprep.subr.bf16.mxu0 %v494
    %526 = vmatpush1.bf16.msra.mxu0 %v493
    %527 = vmatprep.subr.bf16.mxu0 %v490
    %528 = vmatpush1.bf16.msra.mxu0 %v489
    %529 = vmatprep.subr.bf16.mxu0 0
    %530 = vmatpush2.bf16.msra.mxu0 0
    %531 = vmatprep.subr.bf16.mxu0 0
    %532 = vmatpush2.bf16.msra.mxu0 0
    %533 = vmatprep.subr.bf16.mxu0 0
    %534 = vmatpush2.bf16.msra.mxu0 0
    %535 = vmatprep.subr.bf16.mxu0 0
    %536 = vmatpush2.bf16.msra.mxu0 0
    %537 = vmatprep.subr.bf16.mxu0 0
    %538 = vmatpush2.bf16.msra.mxu0 0
    %539 = vmatprep.subr.bf16.mxu0 0
    %540 = vmatpush2.bf16.msra.mxu0 0
    %541 = vmatprep.subr.bf16.mxu0 0
    %542 = vmatpush2.bf16.msra.mxu0 0
    %543 = vmatprep.subr.bf16.mxu0 0
    %544 = vmatpush2.bf16.msra.mxu0 0
    %545 = vmatprep.mubr.bf16.mxu0 0
    %546 = vmatmul.mubr.bf16.gmra.mxu0 %v511
    %v547 = vpop.f32.mrf.mxu0
    %v548 = vadd.f32 0.0, %v547
    %v549 = vpop.f32.mrf.mxu0
    %v550 = vadd.f32 0.0, %v549
    %v551 = vpop.f32.mrf.mxu0
    %v552 = vpop.f32.mrf.mxu0
    %553 = vdwg.mxu0
    %554 = vmatprep.subr.bf16.mxu0 0
    %555 = vmatpush1.bf16.msra.mxu0 0
    %556 = vmatprep.subr.bf16.mxu0 0
    %557 = vmatpush1.bf16.msra.mxu0 0
    %558 = vmatprep.subr.bf16.mxu0 0
    %559 = vmatpush1.bf16.msra.mxu0 0
    %560 = vmatprep.subr.bf16.mxu0 %v508
    %561 = vmatpush1.bf16.msra.mxu0 %v507
    %562 = vmatprep.subr.bf16.mxu0 %v504
    %563 = vmatpush1.bf16.msra.mxu0 %v503
    %564 = vmatprep.subr.bf16.mxu0 %v500
    %565 = vmatpush1.bf16.msra.mxu0 %v499
    %566 = vmatprep.subr.bf16.mxu0 %v496
    %567 = vmatpush1.bf16.msra.mxu0 %v495
    %568 = vmatprep.subr.bf16.mxu0 %v492
    %569 = vmatpush1.bf16.msra.mxu0 %v491
    %570 = vmatprep.subr.bf16.mxu0 0
    %571 = vmatpush2.bf16.msra.mxu0 0
    %572 = vmatprep.subr.bf16.mxu0 0
    %573 = vmatpush2.bf16.msra.mxu0 0
    %574 = vmatprep.subr.bf16.mxu0 0
    %575 = vmatpush2.bf16.msra.mxu0 0
    %576 = vmatprep.subr.bf16.mxu0 0
    %577 = vmatpush2.bf16.msra.mxu0 0
    %578 = vmatprep.subr.bf16.mxu0 0
    %579 = vmatpush2.bf16.msra.mxu0 0
    %580 = vmatprep.subr.bf16.mxu0 0
    %581 = vmatpush2.bf16.msra.mxu0 0
    %582 = vmatprep.subr.bf16.mxu0 0
    %583 = vmatpush2.bf16.msra.mxu0 0
    %584 = vmatprep.subr.bf16.mxu0 0
    %585 = vmatpush2.bf16.msra.mxu0 0
    %586 = vmatprep.mubr.bf16.mxu0 0
    %587 = vmatmul.mubr.bf16.gmra.mxu0 %v511
    %v588 = vpop.f32.mrf.mxu0
    %v589 = vadd.f32 0.0, %v588
    %v590 = vpop.f32.mrf.mxu0
    %v591 = vadd.f32 0.0, %v590
    %v592 = vpop.f32.mrf.mxu0
    %v593 = vpop.f32.mrf.mxu0
    %594 = vdwg.mxu0
    %595 = vmatprep.subr.mxu0 0.0
    %596 = vmatpush1.msra.mxu0 %v73
    %597 = vmatprep.subr.mxu0 0.0
    %598 = vmatpush1.msra.mxu0 %v72
    %599 = vmatprep.subr.mxu0 0.0
    %600 = vmatpush1.msra.mxu0 %v71
    %601 = vmatprep.subr.mxu0 0.0
    %602 = vmatpush1.msra.mxu0 %v70
    %603 = vmatprep.subr.mxu0 0.0
    %604 = vmatpush1.msra.mxu0 %v69
    %605 = vmatprep.subr.mxu0 0.0
    %606 = vmatpush1.msra.mxu0 %v68
    %607 = vmatprep.subr.mxu0 0.0
    %608 = vmatpush1.msra.mxu0 %v67
    %609 = vmatprep.subr.mxu0 0.0
    %610 = vmatpush1.msra.mxu0 %v66
    %611 = vmatprep.subr.mxu0 0.0
    %612 = vmatpush1.msra.mxu0 %v65
    %613 = vmatprep.subr.mxu0 0.0
    %614 = vmatpush1.msra.mxu0 %v64
    %615 = vmatprep.subr.mxu0 0.0
    %616 = vmatpush1.msra.mxu0 %v63
    %617 = vmatprep.subr.mxu0 0.0
    %618 = vmatpush1.msra.mxu0 %v62
    %619 = vmatprep.subr.mxu0 0.0
    %620 = vmatpush1.msra.mxu0 %v61
    %621 = vmatprep.subr.mxu0 0.0
    %622 = vmatpush1.msra.mxu0 %v60
    %623 = vmatprep.subr.mxu0 0.0
    %624 = vmatpush1.msra.mxu0 %v59
    %625 = vmatprep.subr.mxu0 0.0
    %626 = vmatpush1.msra.mxu0 %v58
    %627 = vmatprep.subr.mxu0 0.0
    %628 = vmatpush2.msra.mxu0 %v89
    %629 = vmatprep.subr.mxu0 0.0
    %630 = vmatpush2.msra.mxu0 %v88
    %631 = vmatprep.subr.mxu0 0.0
    %632 = vmatpush2.msra.mxu0 %v87
    %633 = vmatprep.subr.mxu0 0.0
    %634 = vmatpush2.msra.mxu0 %v86
    %635 = vmatprep.subr.mxu0 0.0
    %636 = vmatpush2.msra.mxu0 %v85
    %637 = vmatprep.subr.mxu0 0.0
    %638 = vmatpush2.msra.mxu0 %v84
    %639 = vmatprep.subr.mxu0 0.0
    %640 = vmatpush2.msra.mxu0 %v83
    %641 = vmatprep.subr.mxu0 0.0
    %642 = vmatpush2.msra.mxu0 %v82
    %643 = vmatprep.subr.mxu0 0.0
    %644 = vmatpush2.msra.mxu0 %v81
    %645 = vmatprep.subr.mxu0 0.0
    %646 = vmatpush2.msra.mxu0 %v80
    %647 = vmatprep.subr.mxu0 0.0
    %648 = vmatpush2.msra.mxu0 %v79
    %649 = vmatprep.subr.mxu0 0.0
    %650 = vmatpush2.msra.mxu0 %v78
    %651 = vmatprep.subr.mxu0 0.0
    %652 = vmatpush2.msra.mxu0 %v77
    %653 = vmatprep.subr.mxu0 0.0
    %654 = vmatpush2.msra.mxu0 %v76
    %655 = vmatprep.subr.mxu0 0.0
    %656 = vmatpush2.msra.mxu0 %v75
    %657 = vmatprep.subr.mxu0 0.0
    %658 = vmatpush2.msra.mxu0 %v74
    %659 = vmatprep.mubr.f32.mxu0 %v550
    %660 = vmatmul.mubr.f32.gmra.mxu0 %v548
    %v661 = vpop.f32.mrf.mxu0
    %v662 = vadd.f32 0.0, %v661
    %v663 = vpop.f32.mrf.mxu0
    %664 = vdwg.mxu0
    %665 = vmatprep.subr.mxu0 0.0
    %666 = vmatpush1.msra.mxu0 %v105
    %667 = vmatprep.subr.mxu0 0.0
    %668 = vmatpush1.msra.mxu0 %v104
    %669 = vmatprep.subr.mxu0 0.0
    %670 = vmatpush1.msra.mxu0 %v103
    %671 = vmatprep.subr.mxu0 0.0
    %672 = vmatpush1.msra.mxu0 %v102
    %673 = vmatprep.subr.mxu0 0.0
    %674 = vmatpush1.msra.mxu0 %v101
    %675 = vmatprep.subr.mxu0 0.0
    %676 = vmatpush1.msra.mxu0 %v100
    %677 = vmatprep.subr.mxu0 0.0
    %678 = vmatpush1.msra.mxu0 %v99
    %679 = vmatprep.subr.mxu0 0.0
    %680 = vmatpush1.msra.mxu0 %v98
    %681 = vmatprep.subr.mxu0 0.0
    %682 = vmatpush1.msra.mxu0 %v97
    %683 = vmatprep.subr.mxu0 0.0
    %684 = vmatpush1.msra.mxu0 %v96
    %685 = vmatprep.subr.mxu0 0.0
    %686 = vmatpush1.msra.mxu0 %v95
    %687 = vmatprep.subr.mxu0 0.0
    %688 = vmatpush1.msra.mxu0 %v94
    %689 = vmatprep.subr.mxu0 0.0
    %690 = vmatpush1.msra.mxu0 %v93
    %691 = vmatprep.subr.mxu0 0.0
    %692 = vmatpush1.msra.mxu0 %v92
    %693 = vmatprep.subr.mxu0 0.0
    %694 = vmatpush1.msra.mxu0 %v91
    %695 = vmatprep.subr.mxu0 0.0
    %696 = vmatpush1.msra.mxu0 %v90
    %697 = vmatprep.subr.mxu0 0.0
    %698 = vmatpush2.msra.mxu0 %v121
    %699 = vmatprep.subr.mxu0 0.0
    %700 = vmatpush2.msra.mxu0 %v120
    %701 = vmatprep.subr.mxu0 0.0
    %702 = vmatpush2.msra.mxu0 %v119
    %703 = vmatprep.subr.mxu0 0.0
    %704 = vmatpush2.msra.mxu0 %v118
    %705 = vmatprep.subr.mxu0 0.0
    %706 = vmatpush2.msra.mxu0 %v117
    %707 = vmatprep.subr.mxu0 0.0
    %708 = vmatpush2.msra.mxu0 %v116
    %709 = vmatprep.subr.mxu0 0.0
    %710 = vmatpush2.msra.mxu0 %v115
    %711 = vmatprep.subr.mxu0 0.0
    %712 = vmatpush2.msra.mxu0 %v114
    %713 = vmatprep.subr.mxu0 0.0
    %714 = vmatpush2.msra.mxu0 %v113
    %715 = vmatprep.subr.mxu0 0.0
    %716 = vmatpush2.msra.mxu0 %v112
    %717 = vmatprep.subr.mxu0 0.0
    %718 = vmatpush2.msra.mxu0 %v111
    %719 = vmatprep.subr.mxu0 0.0
    %720 = vmatpush2.msra.mxu0 %v110
    %721 = vmatprep.subr.mxu0 0.0
    %722 = vmatpush2.msra.mxu0 %v109
    %723 = vmatprep.subr.mxu0 0.0
    %724 = vmatpush2.msra.mxu0 %v108
    %725 = vmatprep.subr.mxu0 0.0
    %726 = vmatpush2.msra.mxu0 %v107
    %727 = vmatprep.subr.mxu0 0.0
    %728 = vmatpush2.msra.mxu0 %v106
    %729 = vmatprep.mubr.f32.mxu0 %v591
    %730 = vmatmul.mubr.f32.gmra.mxu0 %v589
    %v731 = vpop.f32.mrf.mxu0
    %v732 = vadd.f32 %v662, %v731
    %v733 = vpop.f32.mrf.mxu0
    %734 = vdwg.mxu0
    %v735 = vmul.f32 %v548, %v548
    %v736 = vmul.f32 %v550, %v550
    %v737 = vmul.f32 %v589, %v589
    %v738 = vmul.f32 %v591, %v591
    %739 = vmatprep.subr.mxu0 0.0
    %740 = vmatpush1.msra.mxu0 %v73
    %741 = vmatprep.subr.mxu0 0.0
    %742 = vmatpush1.msra.mxu0 %v72
    %743 = vmatprep.subr.mxu0 0.0
    %744 = vmatpush1.msra.mxu0 %v71
    %745 = vmatprep.subr.mxu0 0.0
    %746 = vmatpush1.msra.mxu0 %v70
    %747 = vmatprep.subr.mxu0 0.0
    %748 = vmatpush1.msra.mxu0 %v69
    %749 = vmatprep.subr.mxu0 0.0
    %750 = vmatpush1.msra.mxu0 %v68
    %751 = vmatprep.subr.mxu0 0.0
    %752 = vmatpush1.msra.mxu0 %v67
    %753 = vmatprep.subr.mxu0 0.0
    %754 = vmatpush1.msra.mxu0 %v66
    %755 = vmatprep.subr.mxu0 0.0
    %756 = vmatpush1.msra.mxu0 %v65
    %757 = vmatprep.subr.mxu0 0.0
    %758 = vmatpush1.msra.mxu0 %v64
    %759 = vmatprep.subr.mxu0 0.0
    %760 = vmatpush1.msra.mxu0 %v63
    %761 = vmatprep.subr.mxu0 0.0
    %762 = vmatpush1.msra.mxu0 %v62
    %763 = vmatprep.subr.mxu0 0.0
    %764 = vmatpush1.msra.mxu0 %v61
    %765 = vmatprep.subr.mxu0 0.0
    %766 = vmatpush1.msra.mxu0 %v60
    %767 = vmatprep.subr.mxu0 0.0
    %768 = vmatpush1.msra.mxu0 %v59
    %769 = vmatprep.subr.mxu0 0.0
    %770 = vmatpush1.msra.mxu0 %v58
    %771 = vmatprep.subr.mxu0 0.0
    %772 = vmatpush2.msra.mxu0 %v89
    %773 = vmatprep.subr.mxu0 0.0
    %774 = vmatpush2.msra.mxu0 %v88
    %775 = vmatprep.subr.mxu0 0.0
    %776 = vmatpush2.msra.mxu0 %v87
    %777 = vmatprep.subr.mxu0 0.0
    %778 = vmatpush2.msra.mxu0 %v86
    %779 = vmatprep.subr.mxu0 0.0
    %780 = vmatpush2.msra.mxu0 %v85
    %781 = vmatprep.subr.mxu0 0.0
    %782 = vmatpush2.msra.mxu0 %v84
    %783 = vmatprep.subr.mxu0 0.0
    %784 = vmatpush2.msra.mxu0 %v83
    %785 = vmatprep.subr.mxu0 0.0
    %786 = vmatpush2.msra.mxu0 %v82
    %787 = vmatprep.subr.mxu0 0.0
    %788 = vmatpush2.msra.mxu0 %v81
    %789 = vmatprep.subr.mxu0 0.0
    %790 = vmatpush2.msra.mxu0 %v80
    %791 = vmatprep.subr.mxu0 0.0
    %792 = vmatpush2.msra.mxu0 %v79
    %793 = vmatprep.subr.mxu0 0.0
    %794 = vmatpush2.msra.mxu0 %v78
    %795 = vmatprep.subr.mxu0 0.0
    %796 = vmatpush2.msra.mxu0 %v77
    %797 = vmatprep.subr.mxu0 0.0
    %798 = vmatpush2.msra.mxu0 %v76
    %799 = vmatprep.subr.mxu0 0.0
    %800 = vmatpush2.msra.mxu0 %v75
    %801 = vmatprep.subr.mxu0 0.0
    %802 = vmatpush2.msra.mxu0 %v74
    %803 = vmatprep.mubr.f32.mxu0 %v736
    %804 = vmatmul.mubr.f32.gmra.mxu0 %v735
    %v805 = vpop.f32.mrf.mxu0
    %v806 = vadd.f32 0.0, %v805
    %v807 = vpop.f32.mrf.mxu0
    %808 = vdwg.mxu0
    %809 = vmatprep.subr.mxu0 0.0
    %810 = vmatpush1.msra.mxu0 %v105
    %811 = vmatprep.subr.mxu0 0.0
    %812 = vmatpush1.msra.mxu0 %v104
    %813 = vmatprep.subr.mxu0 0.0
    %814 = vmatpush1.msra.mxu0 %v103
    %815 = vmatprep.subr.mxu0 0.0
    %816 = vmatpush1.msra.mxu0 %v102
    %817 = vmatprep.subr.mxu0 0.0
    %818 = vmatpush1.msra.mxu0 %v101
    %819 = vmatprep.subr.mxu0 0.0
    %820 = vmatpush1.msra.mxu0 %v100
    %821 = vmatprep.subr.mxu0 0.0
    %822 = vmatpush1.msra.mxu0 %v99
    %823 = vmatprep.subr.mxu0 0.0
    %824 = vmatpush1.msra.mxu0 %v98
    %825 = vmatprep.subr.mxu0 0.0
    %826 = vmatpush1.msra.mxu0 %v97
    %827 = vmatprep.subr.mxu0 0.0
    %828 = vmatpush1.msra.mxu0 %v96
    %829 = vmatprep.subr.mxu0 0.0
    %830 = vmatpush1.msra.mxu0 %v95
    %831 = vmatprep.subr.mxu0 0.0
    %832 = vmatpush1.msra.mxu0 %v94
    %833 = vmatprep.subr.mxu0 0.0
    %834 = vmatpush1.msra.mxu0 %v93
    %835 = vmatprep.subr.mxu0 0.0
    %836 = vmatpush1.msra.mxu0 %v92
    %837 = vmatprep.subr.mxu0 0.0
    %838 = vmatpush1.msra.mxu0 %v91
    %839 = vmatprep.subr.mxu0 0.0
    %840 = vmatpush1.msra.mxu0 %v90
    %841 = vmatprep.subr.mxu0 0.0
    %842 = vmatpush2.msra.mxu0 %v121
    %843 = vmatprep.subr.mxu0 0.0
    %844 = vmatpush2.msra.mxu0 %v120
    %845 = vmatprep.subr.mxu0 0.0
    %846 = vmatpush2.msra.mxu0 %v119
    %847 = vmatprep.subr.mxu0 0.0
    %848 = vmatpush2.msra.mxu0 %v118
    %849 = vmatprep.subr.mxu0 0.0
    %850 = vmatpush2.msra.mxu0 %v117
    %851 = vmatprep.subr.mxu0 0.0
    %852 = vmatpush2.msra.mxu0 %v116
    %853 = vmatprep.subr.mxu0 0.0
    %854 = vmatpush2.msra.mxu0 %v115
    %855 = vmatprep.subr.mxu0 0.0
    %856 = vmatpush2.msra.mxu0 %v114
    %857 = vmatprep.subr.mxu0 0.0
    %858 = vmatpush2.msra.mxu0 %v113
    %859 = vmatprep.subr.mxu0 0.0
    %860 = vmatpush2.msra.mxu0 %v112
    %861 = vmatprep.subr.mxu0 0.0
    %862 = vmatpush2.msra.mxu0 %v111
    %863 = vmatprep.subr.mxu0 0.0
    %864 = vmatpush2.msra.mxu0 %v110
    %865 = vmatprep.subr.mxu0 0.0
    %866 = vmatpush2.msra.mxu0 %v109
    %867 = vmatprep.subr.mxu0 0.0
    %868 = vmatpush2.msra.mxu0 %v108
    %869 = vmatprep.subr.mxu0 0.0
    %870 = vmatpush2.msra.mxu0 %v107
    %871 = vmatprep.subr.mxu0 0.0
    %872 = vmatpush2.msra.mxu0 %v106
    %873 = vmatprep.mubr.f32.mxu0 %v738
    %874 = vmatmul.mubr.f32.gmra.mxu0 %v737
    %v875 = vpop.f32.mrf.mxu0
    %v876 = vadd.f32 %v806, %v875
    %v877 = vpop.f32.mrf.mxu0
    %878 = vdwg.mxu0
    %v879 = vld [vmem:[%s4] sm:$0xff]
    %v880 = vld [vmem:[%s5] sm:$0xff]
    %v881 = vmul.f32 %v732, 0.001953125
    %v882 = vmul.f32 %v876, 0.001953125
    %v883 = vmul.f32 %v881, %v881
    %v884 = vsub.f32 %v882, %v883
    %v885 = vmax.f32 %v884, 0.0
    %v886 = vadd.f32 %v885, 1e-05
    %v887 = vrsqrt.pop %v886
    %889 = vrot.lane.b32.xlu0 %v887, 126
    %v890 = vpop.permute.xlu0 %889
    %v892 = vmul.f32 %v879, %v890
    %894 = vrot.lane.b32.xlu0 %v892, 2
    %v895 = vpop.permute.xlu0 %894
    %v897 = vmul.f32 %v881, %v895
    %899 = vrot.lane.b32.xlu0 %v897, 126
    %v900 = vpop.permute.xlu0 %899
    %v902 = vsub.f32 %v880, %v900
    %903 = vset.pattern.permute.xlu0 0
    %904 = vperm.xlu0 %903, %v892
    %v905 = vpop.permute.xlu0 %904
    %v907 = vmul.f32 %v548, %v905
    %v908 = vmul.f32 %v550, %v905
    %v909 = vmul.f32 %v589, %v905
    %v910 = vmul.f32 %v591, %v905
    %912 = vset.pattern.permute.xlu0 0
    %913 = vperm.xlu0 %912, %v902
    %v914 = vpop.permute.xlu0 %913
    %v916 = vadd.f32 %v907, %v914
    %v917 = vadd.f32 %v908, %v914
    %v918 = vadd.f32 %v909, %v914
    %v919 = vadd.f32 %v910, %v914
    %v920 = vmax.f32 %v916, 0.0
    %v921 = vmax.f32 %v917, 0.0
    %v922 = vmax.f32 %v918, 0.0
    %v923 = vmax.f32 %v919, 0.0
    %v924 = vld [vmem:[%s6] sm:$0xf]
    %925 = vrot.lane.b32.xlu0 %v920, 17
    %v926 = vpop.permute.xlu0 %925
    %927 = vrot.lane.b32.xlu0 %v921, 17
    %v928 = vpop.permute.xlu0 %927
    %929 = vrot.lane.b32.xlu0 %v922, 17
    %v930 = vpop.permute.xlu0 %929
    %931 = vrot.lane.b32.xlu0 %v923, 17
    %v932 = vpop.permute.xlu0 %931
    %v933 = vsel %vm137, %v930, %v932
    %v934 = vsel %vm137, %v928, %v930
    %v935 = vsel %vm137, %v926, %v928
    %v936 = vsel %vm137, %v932, %v926
    %v937 = vmul.f32 %v936, %v145
    %v938 = vmul.f32 %v935, %v149
    %v939 = vmul.f32 %v934, %v153
    %v940 = vmul.f32 %v933, %v157
    %941 = vst [vmem:[#allocation2] sm:$0xff] %v937
    %942 = vst [vmem:[#allocation2 + $0x8] sm:$0xff] %v938
    %943 = vst [vmem:[#allocation2 + $0x10] sm:$0xff] %v939
    %944 = vst [vmem:[#allocation2 + $0x18] sm:$0xff] %v940
    %945 = vrot.lane.b32.xlu0 %v920, 16
    %v946 = vpop.permute.xlu0 %945
    %947 = vrot.lane.b32.xlu0 %v921, 16
    %v948 = vpop.permute.xlu0 %947
    %949 = vrot.lane.b32.xlu0 %v922, 16
    %v950 = vpop.permute.xlu0 %949
    %951 = vrot.lane.b32.xlu0 %v923, 16
    %v952 = vpop.permute.xlu0 %951
    %v953 = vsel %vm174, %v950, %v952
    %v954 = vsel %vm174, %v948, %v950
    %v955 = vsel %vm174, %v946, %v948
    %v956 = vsel %vm174, %v952, %v946
    %v957 = vmul.f32 %v956, %v182
    %v958 = vmul.f32 %v955, %v186
    %v959 = vmul.f32 %v954, %v190
    %v960 = vmul.f32 %v953, %v194
    %961 = vst [vmem:[#allocation2 + $0x20] sm:$0xff] %v957
    %962 = vst [vmem:[#allocation2 + $0x28] sm:$0xff] %v958
    %963 = vst [vmem:[#allocation2 + $0x30] sm:$0xff] %v959
    %964 = vst [vmem:[#allocation2 + $0x38] sm:$0xff] %v960
    %965 = vrot.lane.b32.xlu0 %v920, 15
    %v966 = vpop.permute.xlu0 %965
    %967 = vrot.lane.b32.xlu0 %v921, 15
    %v968 = vpop.permute.xlu0 %967
    %969 = vrot.lane.b32.xlu0 %v922, 15
    %v970 = vpop.permute.xlu0 %969
    %971 = vrot.lane.b32.xlu0 %v923, 15
    %v972 = vpop.permute.xlu0 %971
    %v973 = vsel %vm211, %v970, %v972
    %v974 = vsel %vm211, %v968, %v970
    %v975 = vsel %vm211, %v966, %v968
    %v976 = vsel %vm211, %v972, %v966
    %v977 = vmul.f32 %v976, %v219
    %v978 = vmul.f32 %v975, %v223
    %v979 = vmul.f32 %v974, %v227
    %v980 = vmul.f32 %v973, %v231
    %981 = vst [vmem:[#allocation2 + $0x40] sm:$0xff] %v977
    %982 = vst [vmem:[#allocation2 + $0x48] sm:$0xff] %v978
    %983 = vst [vmem:[#allocation2 + $0x50] sm:$0xff] %v979
    %984 = vst [vmem:[#allocation2 + $0x58] sm:$0xff] %v980
    %985 = vrot.lane.b32.xlu0 %v920, 1
    %v986 = vpop.permute.xlu0 %985
    %987 = vrot.lane.b32.xlu0 %v921, 1
    %v988 = vpop.permute.xlu0 %987
    %989 = vrot.lane.b32.xlu0 %v922, 1
    %v990 = vpop.permute.xlu0 %989
    %991 = vrot.lane.b32.xlu0 %v923, 1
    %v992 = vpop.permute.xlu0 %991
    %v993 = vsel %vm248, %v990, %v992
    %v994 = vsel %vm248, %v988, %v990
    %v995 = vsel %vm248, %v986, %v988
    %v996 = vsel %vm248, %v992, %v986
    %v997 = vmul.f32 %v996, %v256
    %v998 = vmul.f32 %v995, %v260
    %v999 = vmul.f32 %v994, %v264
    %v1000 = vmul.f32 %v993, %v268
    %1001 = vst [vmem:[#allocation2 + $0x60] sm:$0xff] %v997
    %1002 = vst [vmem:[#allocation2 + $0x68] sm:$0xff] %v998
    %1003 = vst [vmem:[#allocation2 + $0x70] sm:$0xff] %v999
    %1004 = vst [vmem:[#allocation2 + $0x78] sm:$0xff] %v1000
    %v1005 = vmul.f32 %v920, %v280
    %v1006 = vmul.f32 %v921, %v284
    %v1007 = vmul.f32 %v922, %v288
    %v1008 = vmul.f32 %v923, %v292
    %1009 = vst [vmem:[#allocation2 + $0x80] sm:$0xff] %v1005
    %1010 = vst [vmem:[#allocation2 + $0x88] sm:$0xff] %v1006
    %1011 = vst [vmem:[#allocation2 + $0x90] sm:$0xff] %v1007
    %1012 = vst [vmem:[#allocation2 + $0x98] sm:$0xff] %v1008
    %1013 = vrot.lane.b32.xlu0 %v920, 127
    %v1014 = vpop.permute.xlu0 %1013
    %1015 = vrot.lane.b32.xlu0 %v921, 127
    %v1016 = vpop.permute.xlu0 %1015
    %1017 = vrot.lane.b32.xlu0 %v922, 127
    %v1018 = vpop.permute.xlu0 %1017
    %1019 = vrot.lane.b32.xlu0 %v923, 127
    %v1020 = vpop.permute.xlu0 %1019
    %v1021 = vsel %vm309, %v1018, %v1020
    %v1022 = vsel %vm309, %v1016, %v1018
    %v1023 = vsel %vm309, %v1014, %v1016
    %v1024 = vsel %vm309, %v1020, %v1014
    %v1025 = vmul.f32 %v1023, %v317
    %v1026 = vmul.f32 %v1022, %v321
    %v1027 = vmul.f32 %v1021, %v325
    %v1028 = vmul.f32 %v1024, %v329
    %1029 = vst [vmem:[#allocation2 + $0xa0] sm:$0xff] %v1025
    %1030 = vst [vmem:[#allocation2 + $0xa8] sm:$0xff] %v1026
    %1031 = vst [vmem:[#allocation2 + $0xb0] sm:$0xff] %v1027
    %1032 = vst [vmem:[#allocation2 + $0xb8] sm:$0xff] %v1028
    %1033 = vrot.lane.b32.xlu0 %v920, 113
    %v1034 = vpop.permute.xlu0 %1033
    %1035 = vrot.lane.b32.xlu0 %v921, 113
    %v1036 = vpop.permute.xlu0 %1035
    %1037 = vrot.lane.b32.xlu0 %v922, 113
    %v1038 = vpop.permute.xlu0 %1037
    %1039 = vrot.lane.b32.xlu0 %v923, 113
    %v1040 = vpop.permute.xlu0 %1039
    %v1041 = vsel %vm346, %v1038, %v1040
    %v1042 = vsel %vm346, %v1036, %v1038
    %v1043 = vsel %vm346, %v1034, %v1036
    %v1044 = vsel %vm346, %v1040, %v1034
    %v1045 = vmul.f32 %v1043, %v354
    %v1046 = vmul.f32 %v1042, %v358
    %v1047 = vmul.f32 %v1041, %v362
    %v1048 = vmul.f32 %v1044, %v366
    %1049 = vst [vmem:[#allocation2 + $0xc0] sm:$0xff] %v1045
    %1050 = vst [vmem:[#allocation2 + $0xc8] sm:$0xff] %v1046
    %1051 = vst [vmem:[#allocation2 + $0xd0] sm:$0xff] %v1047
    %1052 = vst [vmem:[#allocation2 + $0xd8] sm:$0xff] %v1048
    %1053 = vrot.lane.b32.xlu0 %v920, 112
    %v1054 = vpop.permute.xlu0 %1053
    %1055 = vrot.lane.b32.xlu0 %v921, 112
    %v1056 = vpop.permute.xlu0 %1055
    %1057 = vrot.lane.b32.xlu0 %v922, 112
    %v1058 = vpop.permute.xlu0 %1057
    %1059 = vrot.lane.b32.xlu0 %v923, 112
    %v1060 = vpop.permute.xlu0 %1059
    %v1061 = vsel %vm383, %v1058, %v1060
    %v1062 = vsel %vm383, %v1056, %v1058
    %v1063 = vsel %vm383, %v1054, %v1056
    %v1064 = vsel %vm383, %v1060, %v1054
    %v1065 = vmul.f32 %v1063, %v391
    %v1066 = vmul.f32 %v1062, %v395
    %v1067 = vmul.f32 %v1061, %v399
    %v1068 = vmul.f32 %v1064, %v403
    %1069 = vst [vmem:[#allocation2 + $0xe0] sm:$0xff] %v1065
    %1070 = vst [vmem:[#allocation2 + $0xe8] sm:$0xff] %v1066
    %1071 = vst [vmem:[#allocation2 + $0xf0] sm:$0xff] %v1067
    %1072 = vst [vmem:[#allocation2 + $0xf8] sm:$0xff] %v1068
    %1073 = vrot.lane.b32.xlu0 %v920, 111
    %v1074 = vpop.permute.xlu0 %1073
    %1075 = vrot.lane.b32.xlu0 %v921, 111
    %v1076 = vpop.permute.xlu0 %1075
    %1077 = vrot.lane.b32.xlu0 %v922, 111
    %v1078 = vpop.permute.xlu0 %1077
    %1079 = vrot.lane.b32.xlu0 %v923, 111
    %v1080 = vpop.permute.xlu0 %1079
    %v1081 = vsel %vm420, %v1078, %v1080
    %v1082 = vsel %vm420, %v1076, %v1078
    %v1083 = vsel %vm420, %v1074, %v1076
    %v1084 = vsel %vm420, %v1080, %v1074
    %v1085 = vmul.f32 %v1083, %v428
    %v1086 = vmul.f32 %v1082, %v432
    %v1087 = vmul.f32 %v1081, %v436
    %v1088 = vmul.f32 %v1084, %v440
    %1089 = vst [vmem:[#allocation2 + $0x100] sm:$0xff] %v1085
    %1090 = vst [vmem:[#allocation2 + $0x108] sm:$0xff] %v1086
    %1091 = vst [vmem:[#allocation2 + $0x110] sm:$0xff] %v1087
    %1092 = vst [vmem:[#allocation2 + $0x118] sm:$0xff] %v1088
    %v1093 = vld [vmem:[#allocation2] sm:$0xff]
    %v1094 = vld [vmem:[#allocation2 + $0x8] sm:$0xff]
    %v1095 = vld [vmem:[#allocation2 + $0x10] sm:$0xff]
    %v1096 = vld [vmem:[#allocation2 + $0x18] sm:$0xff]
    %v1097 = vld [vmem:[#allocation2 + $0x20] sm:$0xff]
    %v1098 = vld [vmem:[#allocation2 + $0x28] sm:$0xff]
    %v1099 = vld [vmem:[#allocation2 + $0x30] sm:$0xff]
    %v1100 = vld [vmem:[#allocation2 + $0x38] sm:$0xff]
    %v1101 = vld [vmem:[#allocation2 + $0x40] sm:$0xff]
    %v1102 = vld [vmem:[#allocation2 + $0x48] sm:$0xff]
    %v1103 = vld [vmem:[#allocation2 + $0x50] sm:$0xff]
    %v1104 = vld [vmem:[#allocation2 + $0x58] sm:$0xff]
    %v1105 = vld [vmem:[#allocation2 + $0x60] sm:$0xff]
    %v1106 = vld [vmem:[#allocation2 + $0x68] sm:$0xff]
    %v1107 = vld [vmem:[#allocation2 + $0x70] sm:$0xff]
    %v1108 = vld [vmem:[#allocation2 + $0x78] sm:$0xff]
    %v1109 = vld [vmem:[#allocation2 + $0x80] sm:$0xff]
    %v1110 = vld [vmem:[#allocation2 + $0x88] sm:$0xff]
    %v1111 = vld [vmem:[#allocation2 + $0x90] sm:$0xff]
    %v1112 = vld [vmem:[#allocation2 + $0x98] sm:$0xff]
    %v1113 = vld [vmem:[#allocation2 + $0xa0] sm:$0xff]
    %v1114 = vld [vmem:[#allocation2 + $0xa8] sm:$0xff]
    %v1115 = vld [vmem:[#allocation2 + $0xb0] sm:$0xff]
    %v1116 = vld [vmem:[#allocation2 + $0xb8] sm:$0xff]
    %v1117 = vld [vmem:[#allocation2 + $0xc0] sm:$0xff]
    %v1118 = vld [vmem:[#allocation2 + $0xc8] sm:$0xff]
    %v1119 = vld [vmem:[#allocation2 + $0xd0] sm:$0xff]
    %v1120 = vld [vmem:[#allocation2 + $0xd8] sm:$0xff]
    %v1121 = vld [vmem:[#allocation2 + $0xe0] sm:$0xff]
    %v1122 = vld [vmem:[#allocation2 + $0xe8] sm:$0xff]
    %v1123 = vld [vmem:[#allocation2 + $0xf0] sm:$0xff]
    %v1124 = vld [vmem:[#allocation2 + $0xf8] sm:$0xff]
    %v1125 = vld [vmem:[#allocation2 + $0x100] sm:$0xff]
    %v1126 = vld [vmem:[#allocation2 + $0x108] sm:$0xff]
    %v1127 = vld [vmem:[#allocation2 + $0x110] sm:$0xff]
    %v1128 = vld [vmem:[#allocation2 + $0x118] sm:$0xff]
    %v1129 = vld [vmem:[#allocation2 + $0x120] sm:$0xff]
    %v1130 = vld [vmem:[#allocation2 + $0x128] sm:$0xff]
    %v1131 = vld [vmem:[#allocation2 + $0x130] sm:$0xff]
    %v1132 = vld [vmem:[#allocation2 + $0x138] sm:$0xff]
    %v1133 = vpack.c.bf16 %v1097, %v1093
    %v1134 = vpack.c.bf16 %v1098, %v1094
    %v1135 = vpack.c.bf16 %v1099, %v1095
    %v1136 = vpack.c.bf16 %v1100, %v1096
    %v1137 = vpack.c.bf16 %v1105, %v1101
    %v1138 = vpack.c.bf16 %v1106, %v1102
    %v1139 = vpack.c.bf16 %v1107, %v1103
    %v1140 = vpack.c.bf16 %v1108, %v1104
    %v1141 = vpack.c.bf16 %v1113, %v1109
    %v1142 = vpack.c.bf16 %v1114, %v1110
    %v1143 = vpack.c.bf16 %v1115, %v1111
    %v1144 = vpack.c.bf16 %v1116, %v1112
    %v1145 = vpack.c.bf16 %v1121, %v1117
    %v1146 = vpack.c.bf16 %v1122, %v1118
    %v1147 = vpack.c.bf16 %v1123, %v1119
    %v1148 = vpack.c.bf16 %v1124, %v1120
    %v1149 = vpack.c.bf16 %v1129, %v1125
    %v1150 = vpack.c.bf16 %v1130, %v1126
    %v1151 = vpack.c.bf16 %v1131, %v1127
    %v1152 = vpack.c.bf16 %v1132, %v1128
    %v1154 = vsel %vm509, %v924, 0
    %1156 = vmatprep.subr.bf16.mxu0 0
    %1157 = vmatpush1.bf16.msra.mxu0 0
    %1158 = vmatprep.subr.bf16.mxu0 0
    %1159 = vmatpush1.bf16.msra.mxu0 0
    %1160 = vmatprep.subr.bf16.mxu0 0
    %1161 = vmatpush1.bf16.msra.mxu0 0
    %1162 = vmatprep.subr.bf16.mxu0 %v1150
    %1163 = vmatpush1.bf16.msra.mxu0 %v1149
    %1164 = vmatprep.subr.bf16.mxu0 %v1146
    %1165 = vmatpush1.bf16.msra.mxu0 %v1145
    %1166 = vmatprep.subr.bf16.mxu0 %v1142
    %1167 = vmatpush1.bf16.msra.mxu0 %v1141
    %1168 = vmatprep.subr.bf16.mxu0 %v1138
    %1169 = vmatpush1.bf16.msra.mxu0 %v1137
    %1170 = vmatprep.subr.bf16.mxu0 %v1134
    %1171 = vmatpush1.bf16.msra.mxu0 %v1133
    %1172 = vmatprep.subr.bf16.mxu0 0
    %1173 = vmatpush2.bf16.msra.mxu0 0
    %1174 = vmatprep.subr.bf16.mxu0 0
    %1175 = vmatpush2.bf16.msra.mxu0 0
    %1176 = vmatprep.subr.bf16.mxu0 0
    %1177 = vmatpush2.bf16.msra.mxu0 0
    %1178 = vmatprep.subr.bf16.mxu0 0
    %1179 = vmatpush2.bf16.msra.mxu0 0
    %1180 = vmatprep.subr.bf16.mxu0 0
    %1181 = vmatpush2.bf16.msra.mxu0 0
    %1182 = vmatprep.subr.bf16.mxu0 0
    %1183 = vmatpush2.bf16.msra.mxu0 0
    %1184 = vmatprep.subr.bf16.mxu0 0
    %1185 = vmatpush2.bf16.msra.mxu0 0
    %1186 = vmatprep.subr.bf16.mxu0 0
    %1187 = vmatpush2.bf16.msra.mxu0 0
    %1188 = vmatprep.mubr.bf16.mxu0 0
    %1189 = vmatmul.mubr.bf16.gmra.mxu0 %v1154
    %v1190 = vpop.f32.mrf.mxu0
    %v1191 = vadd.f32 0.0, %v1190
    %v1192 = vpop.f32.mrf.mxu0
    %v1193 = vadd.f32 0.0, %v1192
    %v1194 = vpop.f32.mrf.mxu0
    %v1195 = vpop.f32.mrf.mxu0
    %1196 = vdwg.mxu0
    %1197 = vmatprep.subr.bf16.mxu0 0
    %1198 = vmatpush1.bf16.msra.mxu0 0
    %1199 = vmatprep.subr.bf16.mxu0 0
    %1200 = vmatpush1.bf16.msra.mxu0 0
    %1201 = vmatprep.subr.bf16.mxu0 0
    %1202 = vmatpush1.bf16.msra.mxu0 0
    %1203 = vmatprep.subr.bf16.mxu0 %v1152
    %1204 = vmatpush1.bf16.msra.mxu0 %v1151
    %1205 = vmatprep.subr.bf16.mxu0 %v1148
    %1206 = vmatpush1.bf16.msra.mxu0 %v1147
    %1207 = vmatprep.subr.bf16.mxu0 %v1144
    %1208 = vmatpush1.bf16.msra.mxu0 %v1143
    %1209 = vmatprep.subr.bf16.mxu0 %v1140
    %1210 = vmatpush1.bf16.msra.mxu0 %v1139
    %1211 = vmatprep.subr.bf16.mxu0 %v1136
    %1212 = vmatpush1.bf16.msra.mxu0 %v1135
    %1213 = vmatprep.subr.bf16.mxu0 0
    %1214 = vmatpush2.bf16.msra.mxu0 0
    %1215 = vmatprep.subr.bf16.mxu0 0
    %1216 = vmatpush2.bf16.msra.mxu0 0
    %1217 = vmatprep.subr.bf16.mxu0 0
    %1218 = vmatpush2.bf16.msra.mxu0 0
    %1219 = vmatprep.subr.bf16.mxu0 0
    %1220 = vmatpush2.bf16.msra.mxu0 0
    %1221 = vmatprep.subr.bf16.mxu0 0
    %1222 = vmatpush2.bf16.msra.mxu0 0
    %1223 = vmatprep.subr.bf16.mxu0 0
    %1224 = vmatpush2.bf16.msra.mxu0 0
    %1225 = vmatprep.subr.bf16.mxu0 0
    %1226 = vmatpush2.bf16.msra.mxu0 0
    %1227 = vmatprep.subr.bf16.mxu0 0
    %1228 = vmatpush2.bf16.msra.mxu0 0
    %1229 = vmatprep.mubr.bf16.mxu0 0
    %1230 = vmatmul.mubr.bf16.gmra.mxu0 %v1154
    %v1231 = vpop.f32.mrf.mxu0
    %v1232 = vadd.f32 0.0, %v1231
    %v1233 = vpop.f32.mrf.mxu0
    %v1234 = vadd.f32 0.0, %v1233
    %v1235 = vpop.f32.mrf.mxu0
    %v1236 = vpop.f32.mrf.mxu0
    %1237 = vdwg.mxu0
    %1238 = vmatprep.subr.mxu0 0.0
    %1239 = vmatpush1.msra.mxu0 %v73
    %1240 = vmatprep.subr.mxu0 0.0
    %1241 = vmatpush1.msra.mxu0 %v72
    %1242 = vmatprep.subr.mxu0 0.0
    %1243 = vmatpush1.msra.mxu0 %v71
    %1244 = vmatprep.subr.mxu0 0.0
    %1245 = vmatpush1.msra.mxu0 %v70
    %1246 = vmatprep.subr.mxu0 0.0
    %1247 = vmatpush1.msra.mxu0 %v69
    %1248 = vmatprep.subr.mxu0 0.0
    %1249 = vmatpush1.msra.mxu0 %v68
    %1250 = vmatprep.subr.mxu0 0.0
    %1251 = vmatpush1.msra.mxu0 %v67
    %1252 = vmatprep.subr.mxu0 0.0
    %1253 = vmatpush1.msra.mxu0 %v66
    %1254 = vmatprep.subr.mxu0 0.0
    %1255 = vmatpush1.msra.mxu0 %v65
    %1256 = vmatprep.subr.mxu0 0.0
    %1257 = vmatpush1.msra.mxu0 %v64
    %1258 = vmatprep.subr.mxu0 0.0
    %1259 = vmatpush1.msra.mxu0 %v63
    %1260 = vmatprep.subr.mxu0 0.0
    %1261 = vmatpush1.msra.mxu0 %v62
    %1262 = vmatprep.subr.mxu0 0.0
    %1263 = vmatpush1.msra.mxu0 %v61
    %1264 = vmatprep.subr.mxu0 0.0
    %1265 = vmatpush1.msra.mxu0 %v60
    %1266 = vmatprep.subr.mxu0 0.0
    %1267 = vmatpush1.msra.mxu0 %v59
    %1268 = vmatprep.subr.mxu0 0.0
    %1269 = vmatpush1.msra.mxu0 %v58
    %1270 = vmatprep.subr.mxu0 0.0
    %1271 = vmatpush2.msra.mxu0 %v89
    %1272 = vmatprep.subr.mxu0 0.0
    %1273 = vmatpush2.msra.mxu0 %v88
    %1274 = vmatprep.subr.mxu0 0.0
    %1275 = vmatpush2.msra.mxu0 %v87
    %1276 = vmatprep.subr.mxu0 0.0
    %1277 = vmatpush2.msra.mxu0 %v86
    %1278 = vmatprep.subr.mxu0 0.0
    %1279 = vmatpush2.msra.mxu0 %v85
    %1280 = vmatprep.subr.mxu0 0.0
    %1281 = vmatpush2.msra.mxu0 %v84
    %1282 = vmatprep.subr.mxu0 0.0
    %1283 = vmatpush2.msra.mxu0 %v83
    %1284 = vmatprep.subr.mxu0 0.0
    %1285 = vmatpush2.msra.mxu0 %v82
    %1286 = vmatprep.subr.mxu0 0.0
    %1287 = vmatpush2.msra.mxu0 %v81
    %1288 = vmatprep.subr.mxu0 0.0
    %1289 = vmatpush2.msra.mxu0 %v80
    %1290 = vmatprep.subr.mxu0 0.0
    %1291 = vmatpush2.msra.mxu0 %v79
    %1292 = vmatprep.subr.mxu0 0.0
    %1293 = vmatpush2.msra.mxu0 %v78
    %1294 = vmatprep.subr.mxu0 0.0
    %1295 = vmatpush2.msra.mxu0 %v77
    %1296 = vmatprep.subr.mxu0 0.0
    %1297 = vmatpush2.msra.mxu0 %v76
    %1298 = vmatprep.subr.mxu0 0.0
    %1299 = vmatpush2.msra.mxu0 %v75
    %1300 = vmatprep.subr.mxu0 0.0
    %1301 = vmatpush2.msra.mxu0 %v74
    %1302 = vmatprep.mubr.f32.mxu0 %v1193
    %1303 = vmatmul.mubr.f32.gmra.mxu0 %v1191
    %v1304 = vpop.f32.mrf.mxu0
    %v1305 = vadd.f32 0.0, %v1304
    %v1306 = vpop.f32.mrf.mxu0
    %1307 = vdwg.mxu0
    %1308 = vmatprep.subr.mxu0 0.0
    %1309 = vmatpush1.msra.mxu0 %v105
    %1310 = vmatprep.subr.mxu0 0.0
    %1311 = vmatpush1.msra.mxu0 %v104
    %1312 = vmatprep.subr.mxu0 0.0
    %1313 = vmatpush1.msra.mxu0 %v103
    %1314 = vmatprep.subr.mxu0 0.0
    %1315 = vmatpush1.msra.mxu0 %v102
    %1316 = vmatprep.subr.mxu0 0.0
    %1317 = vmatpush1.msra.mxu0 %v101
    %1318 = vmatprep.subr.mxu0 0.0
    %1319 = vmatpush1.msra.mxu0 %v100
    %1320 = vmatprep.subr.mxu0 0.0
    %1321 = vmatpush1.msra.mxu0 %v99
    %1322 = vmatprep.subr.mxu0 0.0
    %1323 = vmatpush1.msra.mxu0 %v98
    %1324 = vmatprep.subr.mxu0 0.0
    %1325 = vmatpush1.msra.mxu0 %v97
    %1326 = vmatprep.subr.mxu0 0.0
    %1327 = vmatpush1.msra.mxu0 %v96
    %1328 = vmatprep.subr.mxu0 0.0
    %1329 = vmatpush1.msra.mxu0 %v95
    %1330 = vmatprep.subr.mxu0 0.0
    %1331 = vmatpush1.msra.mxu0 %v94
    %1332 = vmatprep.subr.mxu0 0.0
    %1333 = vmatpush1.msra.mxu0 %v93
    %1334 = vmatprep.subr.mxu0 0.0
    %1335 = vmatpush1.msra.mxu0 %v92
    %1336 = vmatprep.subr.mxu0 0.0
    %1337 = vmatpush1.msra.mxu0 %v91
    %1338 = vmatprep.subr.mxu0 0.0
    %1339 = vmatpush1.msra.mxu0 %v90
    %1340 = vmatprep.subr.mxu0 0.0
    %1341 = vmatpush2.msra.mxu0 %v121
    %1342 = vmatprep.subr.mxu0 0.0
    %1343 = vmatpush2.msra.mxu0 %v120
    %1344 = vmatprep.subr.mxu0 0.0
    %1345 = vmatpush2.msra.mxu0 %v119
    %1346 = vmatprep.subr.mxu0 0.0
    %1347 = vmatpush2.msra.mxu0 %v118
    %1348 = vmatprep.subr.mxu0 0.0
    %1349 = vmatpush2.msra.mxu0 %v117
    %1350 = vmatprep.subr.mxu0 0.0
    %1351 = vmatpush2.msra.mxu0 %v116
    %1352 = vmatprep.subr.mxu0 0.0
    %1353 = vmatpush2.msra.mxu0 %v115
    %1354 = vmatprep.subr.mxu0 0.0
    %1355 = vmatpush2.msra.mxu0 %v114
    %1356 = vmatprep.subr.mxu0 0.0
    %1357 = vmatpush2.msra.mxu0 %v113
    %1358 = vmatprep.subr.mxu0 0.0
    %1359 = vmatpush2.msra.mxu0 %v112
    %1360 = vmatprep.subr.mxu0 0.0
    %1361 = vmatpush2.msra.mxu0 %v111
    %1362 = vmatprep.subr.mxu0 0.0
    %1363 = vmatpush2.msra.mxu0 %v110
    %1364 = vmatprep.subr.mxu0 0.0
    %1365 = vmatpush2.msra.mxu0 %v109
    %1366 = vmatprep.subr.mxu0 0.0
    %1367 = vmatpush2.msra.mxu0 %v108
    %1368 = vmatprep.subr.mxu0 0.0
    %1369 = vmatpush2.msra.mxu0 %v107
    %1370 = vmatprep.subr.mxu0 0.0
    %1371 = vmatpush2.msra.mxu0 %v106
    %1372 = vmatprep.mubr.f32.mxu0 %v1234
    %1373 = vmatmul.mubr.f32.gmra.mxu0 %v1232
    %v1374 = vpop.f32.mrf.mxu0
    %v1375 = vadd.f32 %v1305, %v1374
    %v1376 = vpop.f32.mrf.mxu0
    %1377 = vdwg.mxu0
    %v1378 = vmul.f32 %v1191, %v1191
    %v1379 = vmul.f32 %v1193, %v1193
    %v1380 = vmul.f32 %v1232, %v1232
    %v1381 = vmul.f32 %v1234, %v1234
    %1382 = vmatprep.subr.mxu0 0.0
    %1383 = vmatpush1.msra.mxu0 %v73
    %1384 = vmatprep.subr.mxu0 0.0
    %1385 = vmatpush1.msra.mxu0 %v72
    %1386 = vmatprep.subr.mxu0 0.0
    %1387 = vmatpush1.msra.mxu0 %v71
    %1388 = vmatprep.subr.mxu0 0.0
    %1389 = vmatpush1.msra.mxu0 %v70
    %1390 = vmatprep.subr.mxu0 0.0
    %1391 = vmatpush1.msra.mxu0 %v69
    %1392 = vmatprep.subr.mxu0 0.0
    %1393 = vmatpush1.msra.mxu0 %v68
    %1394 = vmatprep.subr.mxu0 0.0
    %1395 = vmatpush1.msra.mxu0 %v67
    %1396 = vmatprep.subr.mxu0 0.0
    %1397 = vmatpush1.msra.mxu0 %v66
    %1398 = vmatprep.subr.mxu0 0.0
    %1399 = vmatpush1.msra.mxu0 %v65
    %1400 = vmatprep.subr.mxu0 0.0
    %1401 = vmatpush1.msra.mxu0 %v64
    %1402 = vmatprep.subr.mxu0 0.0
    %1403 = vmatpush1.msra.mxu0 %v63
    %1404 = vmatprep.subr.mxu0 0.0
    %1405 = vmatpush1.msra.mxu0 %v62
    %1406 = vmatprep.subr.mxu0 0.0
    %1407 = vmatpush1.msra.mxu0 %v61
    %1408 = vmatprep.subr.mxu0 0.0
    %1409 = vmatpush1.msra.mxu0 %v60
    %1410 = vmatprep.subr.mxu0 0.0
    %1411 = vmatpush1.msra.mxu0 %v59
    %1412 = vmatprep.subr.mxu0 0.0
    %1413 = vmatpush1.msra.mxu0 %v58
    %1414 = vmatprep.subr.mxu0 0.0
    %1415 = vmatpush2.msra.mxu0 %v89
    %1416 = vmatprep.subr.mxu0 0.0
    %1417 = vmatpush2.msra.mxu0 %v88
    %1418 = vmatprep.subr.mxu0 0.0
    %1419 = vmatpush2.msra.mxu0 %v87
    %1420 = vmatprep.subr.mxu0 0.0
    %1421 = vmatpush2.msra.mxu0 %v86
    %1422 = vmatprep.subr.mxu0 0.0
    %1423 = vmatpush2.msra.mxu0 %v85
    %1424 = vmatprep.subr.mxu0 0.0
    %1425 = vmatpush2.msra.mxu0 %v84
    %1426 = vmatprep.subr.mxu0 0.0
    %1427 = vmatpush2.msra.mxu0 %v83
    %1428 = vmatprep.subr.mxu0 0.0
    %1429 = vmatpush2.msra.mxu0 %v82
    %1430 = vmatprep.subr.mxu0 0.0
    %1431 = vmatpush2.msra.mxu0 %v81
    %1432 = vmatprep.subr.mxu0 0.0
    %1433 = vmatpush2.msra.mxu0 %v80
    %1434 = vmatprep.subr.mxu0 0.0
    %1435 = vmatpush2.msra.mxu0 %v79
    %1436 = vmatprep.subr.mxu0 0.0
    %1437 = vmatpush2.msra.mxu0 %v78
    %1438 = vmatprep.subr.mxu0 0.0
    %1439 = vmatpush2.msra.mxu0 %v77
    %1440 = vmatprep.subr.mxu0 0.0
    %1441 = vmatpush2.msra.mxu0 %v76
    %1442 = vmatprep.subr.mxu0 0.0
    %1443 = vmatpush2.msra.mxu0 %v75
    %1444 = vmatprep.subr.mxu0 0.0
    %1445 = vmatpush2.msra.mxu0 %v74
    %1446 = vmatprep.mubr.f32.mxu0 %v1379
    %1447 = vmatmul.mubr.f32.gmra.mxu0 %v1378
    %v1448 = vpop.f32.mrf.mxu0
    %v1449 = vadd.f32 0.0, %v1448
    %v1450 = vpop.f32.mrf.mxu0
    %1451 = vdwg.mxu0
    %1452 = vmatprep.subr.mxu0 0.0
    %1453 = vmatpush1.msra.mxu0 %v105
    %1454 = vmatprep.subr.mxu0 0.0
    %1455 = vmatpush1.msra.mxu0 %v104
    %1456 = vmatprep.subr.mxu0 0.0
    %1457 = vmatpush1.msra.mxu0 %v103
    %1458 = vmatprep.subr.mxu0 0.0
    %1459 = vmatpush1.msra.mxu0 %v102
    %1460 = vmatprep.subr.mxu0 0.0
    %1461 = vmatpush1.msra.mxu0 %v101
    %1462 = vmatprep.subr.mxu0 0.0
    %1463 = vmatpush1.msra.mxu0 %v100
    %1464 = vmatprep.subr.mxu0 0.0
    %1465 = vmatpush1.msra.mxu0 %v99
    %1466 = vmatprep.subr.mxu0 0.0
    %1467 = vmatpush1.msra.mxu0 %v98
    %1468 = vmatprep.subr.mxu0 0.0
    %1469 = vmatpush1.msra.mxu0 %v97
    %1470 = vmatprep.subr.mxu0 0.0
    %1471 = vmatpush1.msra.mxu0 %v96
    %1472 = vmatprep.subr.mxu0 0.0
    %1473 = vmatpush1.msra.mxu0 %v95
    %1474 = vmatprep.subr.mxu0 0.0
    %1475 = vmatpush1.msra.mxu0 %v94
    %1476 = vmatprep.subr.mxu0 0.0
    %1477 = vmatpush1.msra.mxu0 %v93
    %1478 = vmatprep.subr.mxu0 0.0
    %1479 = vmatpush1.msra.mxu0 %v92
    %1480 = vmatprep.subr.mxu0 0.0
    %1481 = vmatpush1.msra.mxu0 %v91
    %1482 = vmatprep.subr.mxu0 0.0
    %1483 = vmatpush1.msra.mxu0 %v90
    %1484 = vmatprep.subr.mxu0 0.0
    %1485 = vmatpush2.msra.mxu0 %v121
    %1486 = vmatprep.subr.mxu0 0.0
    %1487 = vmatpush2.msra.mxu0 %v120
    %1488 = vmatprep.subr.mxu0 0.0
    %1489 = vmatpush2.msra.mxu0 %v119
    %1490 = vmatprep.subr.mxu0 0.0
    %1491 = vmatpush2.msra.mxu0 %v118
    %1492 = vmatprep.subr.mxu0 0.0
    %1493 = vmatpush2.msra.mxu0 %v117
    %1494 = vmatprep.subr.mxu0 0.0
    %1495 = vmatpush2.msra.mxu0 %v116
    %1496 = vmatprep.subr.mxu0 0.0
    %1497 = vmatpush2.msra.mxu0 %v115
    %1498 = vmatprep.subr.mxu0 0.0
    %1499 = vmatpush2.msra.mxu0 %v114
    %1500 = vmatprep.subr.mxu0 0.0
    %1501 = vmatpush2.msra.mxu0 %v113
    %1502 = vmatprep.subr.mxu0 0.0
    %1503 = vmatpush2.msra.mxu0 %v112
    %1504 = vmatprep.subr.mxu0 0.0
    %1505 = vmatpush2.msra.mxu0 %v111
    %1506 = vmatprep.subr.mxu0 0.0
    %1507 = vmatpush2.msra.mxu0 %v110
    %1508 = vmatprep.subr.mxu0 0.0
    %1509 = vmatpush2.msra.mxu0 %v109
    %1510 = vmatprep.subr.mxu0 0.0
    %1511 = vmatpush2.msra.mxu0 %v108
    %1512 = vmatprep.subr.mxu0 0.0
    %1513 = vmatpush2.msra.mxu0 %v107
    %1514 = vmatprep.subr.mxu0 0.0
    %1515 = vmatpush2.msra.mxu0 %v106
    %1516 = vmatprep.mubr.f32.mxu0 %v1381
    %1517 = vmatmul.mubr.f32.gmra.mxu0 %v1380
    %v1518 = vpop.f32.mrf.mxu0
    %v1519 = vadd.f32 %v1449, %v1518
    %v1520 = vpop.f32.mrf.mxu0
    %1521 = vdwg.mxu0
    %v1522 = vld [vmem:[%s7] sm:$0xff]
    %v1523 = vld [vmem:[%s8] sm:$0xff]
    %v1524 = vmul.f32 %v1375, 0.001953125
    %v1525 = vmul.f32 %v1519, 0.001953125
    %v1526 = vmul.f32 %v1524, %v1524
    %v1527 = vsub.f32 %v1525, %v1526
    %v1528 = vmax.f32 %v1527, 0.0
    %v1529 = vadd.f32 %v1528, 1e-05
    %v1530 = vrsqrt.pop %v1529
    %1532 = vrot.lane.b32.xlu0 %v1530, 126
    %v1533 = vpop.permute.xlu0 %1532
    %v1535 = vmul.f32 %v1522, %v1533
    %1537 = vrot.lane.b32.xlu0 %v1535, 2
    %v1538 = vpop.permute.xlu0 %1537
    %v1540 = vmul.f32 %v1524, %v1538
    %1542 = vrot.lane.b32.xlu0 %v1540, 126
    %v1543 = vpop.permute.xlu0 %1542
    %v1545 = vsub.f32 %v1523, %v1543
    %v1546 = vmul.f32 %v1375, 0.00390625
    %1547 = vset.pattern.permute.xlu0 0
    %1548 = vperm.xlu0 %1547, %v1535
    %v1549 = vpop.permute.xlu0 %1548
    %v1551 = vmul.f32 %v1546, %v1549
    %1553 = vset.pattern.permute.xlu0 0
    %1554 = vperm.xlu0 %1553, %v1545
    %v1555 = vpop.permute.xlu0 %1554
    %v1557 = vadd.f32 %v1551, %v1555
    %v1558 = vld [vmem:[%s9] sm:$0xff]
    %v1559 = vld [vmem:[%s10] sm:$0xff]
    %1561 = vset.pattern.permute.xlu0 0
    %1562 = vperm.xlu0 %1561, %v1559
    %v1563 = vpop.permute.xlu0 %1562
    %vm1565 = vcmask 64512
    %v1567 = vsel %vm1565, %v1558, 0
    %1569 = vmatprep.subr.mxu0 0.0
    %1570 = vmatpush1.msra.mxu0 0.0
    %1571 = vmatprep.subr.mxu0 0.0
    %1572 = vmatpush1.msra.mxu0 0.0
    %1573 = vmatprep.subr.mxu0 0.0
    %1574 = vmatpush1.msra.mxu0 0.0
    %1575 = vmatprep.subr.mxu0 0.0
    %1576 = vmatpush1.msra.mxu0 0.0
    %1577 = vmatprep.subr.mxu0 0.0
    %1578 = vmatpush1.msra.mxu0 0.0
    %1579 = vmatprep.subr.mxu0 0.0
    %1580 = vmatpush1.msra.mxu0 0.0
    %1581 = vmatprep.subr.mxu0 0.0
    %1582 = vmatpush1.msra.mxu0 0.0
    %1583 = vmatprep.subr.mxu0 0.0
    %1584 = vmatpush1.msra.mxu0 0.0
    %1585 = vmatprep.subr.mxu0 0.0
    %1586 = vmatpush1.msra.mxu0 0.0
    %1587 = vmatprep.subr.mxu0 0.0
    %1588 = vmatpush1.msra.mxu0 0.0
    %1589 = vmatprep.subr.mxu0 0.0
    %1590 = vmatpush1.msra.mxu0 0.0
    %1591 = vmatprep.subr.mxu0 0.0
    %1592 = vmatpush1.msra.mxu0 0.0
    %1593 = vmatprep.subr.mxu0 0.0
    %1594 = vmatpush1.msra.mxu0 0.0
    %1595 = vmatprep.subr.mxu0 0.0
    %1596 = vmatpush1.msra.mxu0 0.0
    %1597 = vmatprep.subr.mxu0 0.0
    %1598 = vmatpush1.msra.mxu0 0.0
    %1599 = vmatprep.subr.mxu0 0.0
    %1600 = vmatpush1.msra.mxu0 %v1557
    %1601 = vmatprep.subr.mxu0 0.0
    %1602 = vmatpush2.msra.mxu0 0.0
    %1603 = vmatprep.subr.mxu0 0.0
    %1604 = vmatpush2.msra.mxu0 0.0
    %1605 = vmatprep.subr.mxu0 0.0
    %1606 = vmatpush2.msra.mxu0 0.0
    %1607 = vmatprep.subr.mxu0 0.0
    %1608 = vmatpush2.msra.mxu0 0.0
    %1609 = vmatprep.subr.mxu0 0.0
    %1610 = vmatpush2.msra.mxu0 0.0
    %1611 = vmatprep.subr.mxu0 0.0
    %1612 = vmatpush2.msra.mxu0 0.0
    %1613 = vmatprep.subr.mxu0 0.0
    %1614 = vmatpush2.msra.mxu0 0.0
    %1615 = vmatprep.subr.mxu0 0.0
    %1616 = vmatpush2.msra.mxu0 0.0
    %1617 = vmatprep.subr.mxu0 0.0
    %1618 = vmatpush2.msra.mxu0 0.0
    %1619 = vmatprep.subr.mxu0 0.0
    %1620 = vmatpush2.msra.mxu0 0.0
    %1621 = vmatprep.subr.mxu0 0.0
    %1622 = vmatpush2.msra.mxu0 0.0
    %1623 = vmatprep.subr.mxu0 0.0
    %1624 = vmatpush2.msra.mxu0 0.0
    %1625 = vmatprep.subr.mxu0 0.0
    %1626 = vmatpush2.msra.mxu0 0.0
    %1627 = vmatprep.subr.mxu0 0.0
    %1628 = vmatpush2.msra.mxu0 0.0
    %1629 = vmatprep.subr.mxu0 0.0
    %1630 = vmatpush2.msra.mxu0 0.0
    %1631 = vmatprep.subr.mxu0 0.0
    %1632 = vmatpush2.msra.mxu0 0.0
    %1633 = vmatprep.mubr.f32.mxu0 0.0
    %1634 = vmatmul.mubr.f32.gmra.mxu0 %v1567
    %v1635 = vpop.f32.mrf.mxu0
    %v1636 = vadd.f32 %v1563, %v1635
    %v1637 = vpop.f32.mrf.mxu0
    %1638 = vdwg.mxu0
    %v1639 = vmax.f32 %v1636, 0.0
    %v1640 = vld [vmem:[%s11] sm:$0xff]
    %v1641 = vld [vmem:[%s12] sm:$0xff]
    %1643 = vset.pattern.permute.xlu0 0
    %1644 = vperm.xlu0 %1643, %v1641
    %v1645 = vpop.permute.xlu0 %1644
    %v1648 = vsel %vm1565, %v1640, 0
    %1650 = vmatprep.subr.mxu0 0.0
    %1651 = vmatpush1.msra.mxu0 0.0
    %1652 = vmatprep.subr.mxu0 0.0
    %1653 = vmatpush1.msra.mxu0 0.0
    %1654 = vmatprep.subr.mxu0 0.0
    %1655 = vmatpush1.msra.mxu0 0.0
    %1656 = vmatprep.subr.mxu0 0.0
    %1657 = vmatpush1.msra.mxu0 0.0
    %1658 = vmatprep.subr.mxu0 0.0
    %1659 = vmatpush1.msra.mxu0 0.0
    %1660 = vmatprep.subr.mxu0 0.0
    %1661 = vmatpush1.msra.mxu0 0.0
    %1662 = vmatprep.subr.mxu0 0.0
    %1663 = vmatpush1.msra.mxu0 0.0
    %1664 = vmatprep.subr.mxu0 0.0
    %1665 = vmatpush1.msra.mxu0 0.0
    %1666 = vmatprep.subr.mxu0 0.0
    %1667 = vmatpush1.msra.mxu0 0.0
    %1668 = vmatprep.subr.mxu0 0.0
    %1669 = vmatpush1.msra.mxu0 0.0
    %1670 = vmatprep.subr.mxu0 0.0
    %1671 = vmatpush1.msra.mxu0 0.0
    %1672 = vmatprep.subr.mxu0 0.0
    %1673 = vmatpush1.msra.mxu0 0.0
    %1674 = vmatprep.subr.mxu0 0.0
    %1675 = vmatpush1.msra.mxu0 0.0
    %1676 = vmatprep.subr.mxu0 0.0
    %1677 = vmatpush1.msra.mxu0 0.0
    %1678 = vmatprep.subr.mxu0 0.0
    %1679 = vmatpush1.msra.mxu0 0.0
    %1680 = vmatprep.subr.mxu0 0.0
    %1681 = vmatpush1.msra.mxu0 %v1639
    %1682 = vmatprep.subr.mxu0 0.0
    %1683 = vmatpush2.msra.mxu0 0.0
    %1684 = vmatprep.subr.mxu0 0.0
    %1685 = vmatpush2.msra.mxu0 0.0
    %1686 = vmatprep.subr.mxu0 0.0
    %1687 = vmatpush2.msra.mxu0 0.0
    %1688 = vmatprep.subr.mxu0 0.0
    %1689 = vmatpush2.msra.mxu0 0.0
    %1690 = vmatprep.subr.mxu0 0.0
    %1691 = vmatpush2.msra.mxu0 0.0
    %1692 = vmatprep.subr.mxu0 0.0
    %1693 = vmatpush2.msra.mxu0 0.0
    %1694 = vmatprep.subr.mxu0 0.0
    %1695 = vmatpush2.msra.mxu0 0.0
    %1696 = vmatprep.subr.mxu0 0.0
    %1697 = vmatpush2.msra.mxu0 0.0
    %1698 = vmatprep.subr.mxu0 0.0
    %1699 = vmatpush2.msra.mxu0 0.0
    %1700 = vmatprep.subr.mxu0 0.0
    %1701 = vmatpush2.msra.mxu0 0.0
    %1702 = vmatprep.subr.mxu0 0.0
    %1703 = vmatpush2.msra.mxu0 0.0
    %1704 = vmatprep.subr.mxu0 0.0
    %1705 = vmatpush2.msra.mxu0 0.0
    %1706 = vmatprep.subr.mxu0 0.0
    %1707 = vmatpush2.msra.mxu0 0.0
    %1708 = vmatprep.subr.mxu0 0.0
    %1709 = vmatpush2.msra.mxu0 0.0
    %1710 = vmatprep.subr.mxu0 0.0
    %1711 = vmatpush2.msra.mxu0 0.0
    %1712 = vmatprep.subr.mxu0 0.0
    %1713 = vmatpush2.msra.mxu0 0.0
    %1714 = vmatprep.mubr.f32.mxu0 0.0
    %1715 = vmatmul.mubr.f32.gmra.mxu0 %v1648
    %v1716 = vpop.f32.mrf.mxu0
    %v1717 = vadd.f32 %v1645, %v1716
    %v1718 = vpop.f32.mrf.mxu0
    %1719 = vdwg.mxu0
    %v1720 = vxor.u32 %v1717, 2147483648
    %v1721 = vmul.f32 %v1720, 1.442695
    %v1722 = vpow.pop %v1721
    %v1723 = vadd.f32 %v1722, 1.0
    %v1724 = vrcp.pop %v1723
    %v1725 = vmul.f32 1.0, %v1724
    %v1726 = vmul.f32 %v1191, %v1549
    %v1727 = vmul.f32 %v1193, %v1549
    %v1728 = vadd.f32 %v1726, %v1555
    %v1729 = vadd.f32 %v1727, %v1555
    %1731 = vset.pattern.permute.xlu0 0
    %1732 = vperm.xlu0 %1731, %v1725
    %v1733 = vpop.permute.xlu0 %1732
    %v1735 = vmul.f32 %v1728, %v1733
    %v1736 = vmul.f32 %v1729, %v1733
    %v1737 = vadd.f32 %v1735, %v46
    %v1738 = vadd.f32 %v1736, %v47
    %1739 = vst [vmem:[#allocation3] sm:$0xff] %v1737
    %1740 = vst [vmem:[#allocation3 + $0x8] sm:$0xff] %v1738
    %v1741 = vmul.f32 %v1232, %v1549
    %v1742 = vmul.f32 %v1234, %v1549
    %v1743 = vadd.f32 %v1741, %v1555
    %v1744 = vadd.f32 %v1742, %v1555
    %1745 = vset.pattern.permute.xlu0 1
    %1746 = vperm.xlu0 %1745, %v1725
    %v1747 = vpop.permute.xlu0 %1746
    %v1749 = vmul.f32 %v1743, %v1747
    %v1750 = vmul.f32 %v1744, %v1747
    %v1751 = vadd.f32 %v1749, %v48
    %v1752 = vadd.f32 %v1750, %v49
    %1753 = vst [vmem:[#allocation3 + $0x10] sm:$0xff] %v1751
    %1754 = vst [vmem:[#allocation3 + $0x18] sm:$0xff] %v1752
    // Predicated region
    $region54: #{tpu_custom_call.1} parent=1 // pred_check
      _
    $region55: #{tpu_custom_call.1} parent=1 // pred_check_branch
      %1756 = sbr.rel (0) target = $region57
    $region56: #{tpu_custom_call.1} parent=1 // pred_region
      %s1758 = ssub.s32 512, 512
      %1759 = vsyncadd [#allocation4], %s1758
      %s1761 = sshll.u32 [#allocation3], 4
      %s1762 = int_to_ptr.vmem [resolvable:$true] %s1761
      %1764 = dma.vmem_to_hbm [thread:$0]  %s1762, 512, %s13, [#allocation4]
    $region57: #{tpu_custom_call.1} parent=1 // pred_fallthru
      _
    // Predicated region
    $region58: #{tpu_custom_call.1} parent=1 // pred_check
      _
    $region59: #{tpu_custom_call.1} parent=1 // pred_check_branch
      %1766 = sbr.rel (0) target = $region61
    $region60: #{tpu_custom_call.1} parent=1 // pred_region
      %1767 = dma.done [#allocation4], 512
    $region61: #{tpu_custom_call.1} parent=1 // pred_fallthru
      _
    %1768 = vsyncpa [#allocation4], 1

</llo_original>
